<compile_context>
chip_gen: v5e
topology: v5e:2x2
jax: 0.10.0
libtpu: 0.0.40
codegen_flags: <defaults>
</compile_context>

<pallas_src>
import math

import jax
import jax.numpy as jnp
from jax import lax
from jax.experimental import pallas as pl
from jax.experimental.pallas import tpu as pltpu


def _round_up(x, m):
    return ((x + m - 1) // m) * m


def make_dlwt_kernel(*, heads, head_dim, seq_len, padded_len, block_q, eps=1e-5):
    H, D = heads, head_dim
    C = H * D
    T, Tp, TQ = seq_len, padded_len, block_q
    NEG = -1e30  # finite "-inf": exp underflows to exactly 0 against any real max

    def kernel(
        x_ref,        # (1, Tp, C)  bf16  full padded sequence for this batch
        ext_ref,      # (1, TQ, 2)  int32 per-query-row allowed-key window [lo, hi)
        mm_ref,       # (1, W, Tp)  bf16  mapping mask (0 / 1)
        wqkv_ref,     # (C, 3C)     bf16  in_proj weight, transposed, Q rows pre-scaled
        bqkv_ref,     # (1, 3C)     f32   in_proj bias, Q part pre-scaled
        wo_ref,       # (C, C)      bf16  out_proj weight, transposed
        bo_ref,       # (1, C)      f32   out_proj bias
        g1_ref,       # (1, C)      f32   ln1 gamma
        be1_ref,      # (1, C)      f32   ln1 beta
        w1_ref,       # (C, F)      bf16  FFN linear1 weight, transposed
        fb1_ref,      # (1, F)      f32   FFN linear1 bias
        w2_ref,       # (F, C)      bf16  FFN linear2 weight, transposed
        fb2_ref,      # (1, C)      f32   FFN linear2 bias
        g2_ref,       # (1, C)      f32   ln2 gamma
        be2_ref,      # (1, C)      f32   ln2 beta
        y_ref,        # (1, TQ, C)  f32   output (query tile)
        halt_ref,     # (1, 1, Tp)  f32   halting score output (written on last tile)
        qkv_buf,      # (Tp, 3C)    bf16  scratch: full-sequence fused QKV for this batch
        ctx_buf,      # (TQ, C)     bf16  scratch: lane-dense per-head context slab
        colsum_ref,   # (1, Tp)     f32   scratch: halting column-sum accumulator
    ):
        qi = pl.program_id(1)
        nq = pl.num_programs(1)

        # ---- once per batch element: fused QKV projection of the full sequence ----
        @pl.when(qi == 0)
        def _():
            qkv = jnp.dot(x_ref[0], wqkv_ref[...],
                          preferred_element_type=jnp.float32) + bqkv_ref[...]
            qkv_buf[...] = qkv.astype(jnp.bfloat16)
            colsum_ref[...] = jnp.zeros_like(colsum_ref)

        q_start = pl.multiple_of(qi * TQ, TQ)

        # ---- rebuild the local-window additive mask in-kernel (no (T,T) HBM bias) ----
        key_idx = lax.broadcasted_iota(jnp.int32, (TQ, Tp), 1)
        lo = ext_ref[0, :, 0:1]                        # (TQ, 1) int32
        hi = ext_ref[0, :, 1:2]
        allowed = jnp.logical_and(key_idx >= lo, key_idx < hi)   # (TQ, Tp) bool

        if Tp != T:
            # Padded query rows must not pollute the halting column sums.
            row_idx = lax.broadcasted_iota(jnp.int32, (TQ, 1), 0) + q_start
            qvalid = (row_idx < T).astype(jnp.float32)

        q_tile = qkv_buf[pl.ds(q_start, TQ), pl.ds(0, C)]        # (TQ, C) bf16
        k_all = qkv_buf[:, C:2 * C]                              # (Tp, C) bf16
        v_all = qkv_buf[:, 2 * C:3 * C]                          # (Tp, C) bf16

        # ---- per-head attention; context written lane-dense into ctx_buf ----
        col_acc = jnp.zeros((1, Tp), jnp.float32)
        for h in range(H):                                       # static unroll, H small
            sl = slice(h * D, (h + 1) * D)
            s = lax.dot_general(q_tile[:, sl], k_all[:, sl],
                                (((1,), (1,)), ((), ())),
                                preferred_element_type=jnp.float32)   # (TQ, Tp)
            s = jnp.where(allowed, s, NEG)
            m = jnp.max(s, axis=-1, keepdims=True)
            e = jnp.exp(s - m)
            p = e * pl.reciprocal(jnp.sum(e, axis=-1, keepdims=True), approx=True)
            if Tp != T:
                p = p * qvalid
            col_acc = col_acc + jnp.sum(p, axis=0, keepdims=True)
            ctx = jnp.dot(p.astype(jnp.bfloat16), v_all[:, sl],
                          preferred_element_type=jnp.float32)        # (TQ, D)
            ctx_buf[:, sl] = ctx.astype(jnp.bfloat16)

        colsum_ref[...] = colsum_ref[...] + col_acc

        # concat-free head merge: single (TQ,C)@(C,C) output projection
        attn_out = jnp.dot(ctx_buf[...], wo_ref[...],
                           preferred_element_type=jnp.float32) + bo_ref[...]

        # ---- residual + LayerNorm1 (f32), on this query tile only ----
        xb = x_ref[0, pl.ds(q_start, TQ), :].astype(jnp.float32)
        x1 = xb + attn_out
        mu1 = jnp.mean(x1, axis=-1, keepdims=True)
        var1 = jnp.mean(jnp.square(x1 - mu1), axis=-1, keepdims=True)
        xln = (x1 - mu1) * lax.rsqrt(var1 + eps) * g1_ref[...] + be1_ref[...]

        # ---- FFN (per query tile: (TQ, F) intermediate only) ----
        # TODO(synk): FeedForwardNetwork source not provided; assumed
        #             Linear(dim, FFNdim) -> ReLU -> Linear(FFNdim, dim).
        h1 = jnp.dot(xln.astype(jnp.bfloat16), w1_ref[...],
                     preferred_element_type=jnp.float32) + fb1_ref[...]
        h1 = jnp.maximum(h1, 0.0)
        ffn = jnp.dot(h1.astype(jnp.bfloat16), w2_ref[...],
                      preferred_element_type=jnp.float32) + fb2_ref[...]

        # ---- residual + LayerNorm2 (f32) ----
        x2 = xln + ffn
        mu2 = jnp.mean(x2, axis=-1, keepdims=True)
        var2 = jnp.mean(jnp.square(x2 - mu2), axis=-1, keepdims=True)
        y = (x2 - mu2) * lax.rsqrt(var2 + eps) * g2_ref[...] + be2_ref[...]
        y_ref[0, :, :] = y.astype(y_ref.dtype)

        # ---- halting score, computed once per batch element on the last tile ----
        @pl.when(qi == nq - 1)
        def _():
            mmb = mm_ref[0].astype(jnp.float32)           # (W, Tp)
            hs = colsum_ref[...] * (1.0 / H)              # query-sum of head-avg weights
            hs = hs * mmb                                 # (W, Tp)
            z = hs + (1.0 - mmb) * (-1e10)
            zm = jnp.max(z, axis=-1, keepdims=True)
            ez = jnp.exp(z - zm)
            sm = ez * pl.reciprocal(jnp.sum(ez, axis=-1, keepdims=True), approx=True)
            sm = sm * mmb
            sm = jnp.where(jnp.isnan(sm), jnp.zeros_like(sm), sm)
            halt_ref[0] = jnp.sum(sm, axis=0, keepdims=True)   # (1, Tp)

    return kernel


def dynamic_local_window_transformer(x, mask, mappingmask, params, head,
                                     *, block_q=128, eps=1e-5):
    """x: (B, T, C) f32, mask: (B, T, T) (nonzero = masked), mappingmask: (B, W, T) 0/1.

    block_q: query-tile size. 128 is a good default for v5e (128-deep MXU);
             use 256 on v6e / v7x (256x256 MXU).
    """
    B, T, C = x.shape
    assert C % head == 0
    D = C // head
    W = mappingmask.shape[1]
    Fdim = params["ffn_w1"].shape[0]
    scale = 1.0 / math.sqrt(D)

    # ---- query tiling ----
    TQ = block_q if T >= block_q else _round_up(T, 8)
    Tp = _round_up(T, TQ)
    NQ = Tp // TQ

    # ---- fold 1/sqrt(D) into Q projection; pre-transpose weights; bf16 MXU operands ----
    wqkv = params["in_proj_weight"].astype(jnp.float32)
    bqkv = params["in_proj_bias"].astype(jnp.float32)
    wqkv = wqkv.at[:C].multiply(scale)
    bqkv = bqkv.at[:C].multiply(scale)
    wqkv_t = wqkv.T.astype(jnp.bfloat16)                                          # (C, 3C)
    wo_t = params["out_proj_weight"].astype(jnp.float32).T.astype(jnp.bfloat16)   # (C, C)
    w1_t = params["ffn_w1"].astype(jnp.float32).T.astype(jnp.bfloat16)            # (C, F)
    w2_t = params["ffn_w2"].astype(jnp.float32).T.astype(jnp.bfloat16)            # (F, C)

    # ---- compress the (B,T,T) local-window mask to per-row [lo, hi) extents ----
    # TODO(synk): assumes each query row's allowed keys form one contiguous window
    #             (true for DLWT dynamic local-window masks).  A fully-masked row is
    #             treated as an empty window instead of producing NaN like PyTorch.
    allowed = (mask == 0)
    any_allowed = jnp.any(allowed, axis=-1)
    lo = jnp.argmax(allowed, axis=-1).astype(jnp.int32)
    hi = (T - jnp.argmax(allowed[..., ::-1], axis=-1)).astype(jnp.int32)
    lo = jnp.where(any_allowed, lo, 0)
    hi = jnp.where(any_allowed, hi, 0)
    ext = jnp.stack([lo, hi], axis=-1)                                             # (B, T, 2)

    # ---- pad the time axis to a multiple of the query tile ----
    if Tp != T:
        pad_t = Tp - T
        x_p = jnp.pad(x, ((0, 0), (0, pad_t), (0, 0)))
        ext_p = jnp.pad(ext, ((0, 0), (0, pad_t), (0, 0)))
        mm_p = jnp.pad(mappingmask, ((0, 0), (0, 0), (0, pad_t)))
    else:
        x_p, ext_p, mm_p = x, ext, mappingmask

    inputs = (
        x_p.astype(jnp.bfloat16),      # x streamed bf16 (halves x HBM traffic)
        ext_p,
        mm_p.astype(jnp.bfloat16),     # mapping mask is exactly 0/1 in bf16
        wqkv_t,
        bqkv.reshape(1, 3 * C),
        wo_t,
        params["out_proj_bias"].reshape(1, C).astype(jnp.float32),
        params["ln1_gamma"].reshape(1, C).astype(jnp.float32),
        params["ln1_beta"].reshape(1, C).astype(jnp.float32),
        w1_t,
        params["ffn_b1"].reshape(1, Fdim).astype(jnp.float32),
        w2_t,
        params["ffn_b2"].reshape(1, C).astype(jnp.float32),
        params["ln2_gamma"].reshape(1, C).astype(jnp.float32),
        params["ln2_beta"].reshape(1, C).astype(jnp.float32),
    )

    def per_batch(shape):
        nd = len(shape)
        return pl.BlockSpec((1,) + tuple(shape[1:]),
                            lambda b, qi, _nd=nd: (b,) + (0,) * (_nd - 1))

    def resident(a):
        nd = a.ndim
        return pl.BlockSpec(a.shape, lambda b, qi, _nd=nd: (0,) * _nd)

    in_specs = [
        per_batch((B, Tp, C)),                                   # x: full seq, resident per batch
        pl.BlockSpec((1, TQ, 2), lambda b, qi: (b, qi, 0)),      # window extents per query tile
        per_batch((B, W, Tp)),                                   # mapping mask
    ] + [resident(a) for a in inputs[3:]]                        # weights/biases stay resident

    out_specs = (
        pl.BlockSpec((1, TQ, C), lambda b, qi: (b, qi, 0)),      # y per query tile
        pl.BlockSpec((1, 1, Tp), lambda b, qi: (b, 0, 0)),       # halt resident across qi
    )
    out_shape = (
        jax.ShapeDtypeStruct((B, Tp, C), jnp.float32),
        jax.ShapeDtypeStruct((B, 1, Tp), jnp.float32),
    )
    scratch_shapes = [
        pltpu.VMEM((Tp, 3 * C), jnp.bfloat16),   # full-sequence fused QKV (current batch)
        pltpu.VMEM((TQ, C), jnp.bfloat16),       # lane-dense per-head context slab
        pltpu.VMEM((1, Tp), jnp.float32),        # halting column-sum accumulator
    ]

    kernel = make_dlwt_kernel(heads=head, head_dim=D, seq_len=T,
                              padded_len=Tp, block_q=TQ, eps=eps)

    y, halt = pl.pallas_call(
        kernel,
        grid=(B, NQ),
        in_specs=in_specs,
        out_specs=out_specs,
        out_shape=out_shape,
        scratch_shapes=scratch_shapes,
        compiler_params=pltpu.CompilerParams(
            dimension_semantics=("parallel", "arbitrary"),   # batch parallel, query tiles arbitrary
            vmem_limit_bytes=48 * 1024 * 1024,               # explicit budget (fits v7x's 64 MiB)
        ),
    )(*inputs)
    return y[:, :T, :], halt[:, 0, :T]


# ---------------------------------------------------------------------------
# Pure-JAX f32 reference (mirrors the PyTorch module) for correctness checking.
# ---------------------------------------------------------------------------
def dlwt_reference(x, mask, mappingmask, params, head, eps=1e-5):
    B, T, C = x.shape
    D = C // head
    qkv = jnp.einsum("btc,dc->btd", x, params["in_proj_weight"]) + params["in_proj_bias"]
    q, k, v = qkv[..., :C], qkv[..., C:2 * C], qkv[..., 2 * C:]

    def split(a):
        return a.reshape(B, T, head, D).transpose(0, 2, 1, 3)

    qh, kh, vh = split(q), split(k), split(v)
    s = jnp.einsum("bhtd,bhsd->bhts", qh, kh) / math.sqrt(D)
    s = jnp.where((mask != 0)[:, None, :, :], -jnp.inf, s)
    p = jax.nn.softmax(s, axis=-1)
    ctx = jnp.einsum("bhts,bhsd->bhtd", p, vh).transpose(0, 2, 1, 3).reshape(B, T, C)
    attn_out = jnp.einsum("btc,dc->btd", ctx, params["out_proj_weight"]) + params["out_proj_bias"]

    attn_w = jnp.mean(p, axis=1)                       # head-averaged weights (B, T, T)
    hs = jnp.sum(attn_w, axis=1)[:, None, :]           # sum over queries -> (B, 1, T)
    mm = mappingmask
    hs = hs * mm
    sm = jax.nn.softmax(hs + (1.0 - mm) * (-1e10), axis=-1) * mm
    sm = jnp.where(jnp.isnan(sm), 0.0, sm)
    halt = jnp.sum(sm, axis=1)

    def ln(a, g, b):
        mu = jnp.mean(a, axis=-1, keepdims=True)
        var = jnp.mean(jnp.square(a - mu), axis=-1, keepdims=True)
        return (a - mu) * jax.lax.rsqrt(var + eps) * g + b

    x1 = ln(x + attn_out, params["ln1_gamma"], params["ln1_beta"])
    h1 = jnp.maximum(jnp.einsum("btc,fc->btf", x1, params["ffn_w1"]) + params["ffn_b1"], 0.0)
    ffn = jnp.einsum("btf,cf->btc", h1, params["ffn_w2"]) + params["ffn_b2"]
    y = ln(x1 + ffn, params["ln2_gamma"], params["ln2_beta"])
    return y, halt


if __name__ == "__main__":
    B, T, C, H, Fdim, W = 2, 8, 32, 4, 64, 2

    key = jax.random.PRNGKey(0)
    keys = jax.random.split(key, 12)

    x = jax.random.normal(keys[0], (B, T, C), jnp.float32)

    # attention mask: nonzero = NOT allowed to attend (local band, diagonal kept)
    idx = jnp.arange(T)
    band = jnp.abs(idx[:, None] - idx[None, :]) <= 1
    mask = jnp.where(band, 0.0, 1.0)
    mask = jnp.broadcast_to(mask[None], (B, T, T)).astype(jnp.float32)

    # mapping mask: each timestep assigned to one of W local windows
    win_id = (idx * W) // T
    mappingmask = (win_id[None, :] == jnp.arange(W)[:, None]).astype(jnp.float32)
    mappingmask = jnp.broadcast_to(mappingmask[None], (B, W, T))

    s = 0.05
    params = {
        "in_proj_weight": s * jax.random.normal(keys[1], (3 * C, C), jnp.float32),
        "in_proj_bias": s * jax.random.normal(keys[2], (3 * C,), jnp.float32),
        "out_proj_weight": s * jax.random.normal(keys[3], (C, C), jnp.float32),
        "out_proj_bias": s * jax.random.normal(keys[4], (C,), jnp.float32),
        "ln1_gamma": jnp.ones((C,), jnp.float32),
        "ln1_beta": jnp.zeros((C,), jnp.float32),
        "ffn_w1": s * jax.random.normal(keys[5], (Fdim, C), jnp.float32),
        "ffn_b1": s * jax.random.normal(keys[6], (Fdim,), jnp.float32),
        "ffn_w2": s * jax.random.normal(keys[7], (C, Fdim), jnp.float32),
        "ffn_b2": s * jax.random.normal(keys[8], (C,), jnp.float32),
        "ln2_gamma": jnp.ones((C,), jnp.float32),
        "ln2_beta": jnp.zeros((C,), jnp.float32),
    }

    y, halt = dynamic_local_window_transformer(x, mask, mappingmask, params, head=H)
    jax.block_until_ready((y, halt))

    y_ref, halt_ref = dlwt_reference(x, mask, mappingmask, params, H)

    assert y.shape == (B, T, C), y.shape
    assert halt.shape == (B, T), halt.shape
    assert not bool(jnp.any(jnp.isnan(y)))
    assert not bool(jnp.any(jnp.isnan(halt)))
    # bf16 weights / inputs + approx reciprocals -> loose tolerance vs f32 reference
    assert float(jnp.max(jnp.abs(y - y_ref))) < 6e-2
    assert float(jnp.max(jnp.abs(halt - halt_ref))) < 2e-2
    print("KERNEL_OK")
</pallas_src>

<mosaic_0001>
module attributes {stable_mosaic.version = 11 : i64} {
  func.func @kernel(%arg0: i32, %arg1: i32, %arg2: memref<1x8x32xbf16, #tpu.memory_space<vmem>>, %arg3: memref<1x8x2xi32, #tpu.memory_space<vmem>>, %arg4: memref<1x2x8xbf16, #tpu.memory_space<vmem>>, %arg5: memref<32x96xbf16, #tpu.memory_space<vmem>>, %arg6: memref<1x96xf32, #tpu.memory_space<vmem>>, %arg7: memref<32x32xbf16, #tpu.memory_space<vmem>>, %arg8: memref<1x32xf32, #tpu.memory_space<vmem>>, %arg9: memref<1x32xf32, #tpu.memory_space<vmem>>, %arg10: memref<1x32xf32, #tpu.memory_space<vmem>>, %arg11: memref<32x64xbf16, #tpu.memory_space<vmem>>, %arg12: memref<1x64xf32, #tpu.memory_space<vmem>>, %arg13: memref<64x32xbf16, #tpu.memory_space<vmem>>, %arg14: memref<1x32xf32, #tpu.memory_space<vmem>>, %arg15: memref<1x32xf32, #tpu.memory_space<vmem>>, %arg16: memref<1x32xf32, #tpu.memory_space<vmem>>, %arg17: memref<1x8x32xf32, #tpu.memory_space<vmem>>, %arg18: memref<1x1x8xf32, #tpu.memory_space<vmem>>, %arg19: memref<8x96xbf16, #tpu.memory_space<vmem>>, %arg20: memref<8x32xbf16, #tpu.memory_space<vmem>>, %arg21: memref<1x8xf32, #tpu.memory_space<vmem>>) attributes {dimension_semantics = [#tpu.dimension_semantics<parallel>, #tpu.dimension_semantics<arbitrary>], iteration_bounds = array<i64: 2, 1>, scalar_prefetch = 0 : i64, scratch_operands = 3 : i64, tpu.core_type = #tpu.core_type<tc>, window_params = [{transform_indices = @transform_0, window_bounds = array<i64: 1, 8, 32>}, {transform_indices = @transform_1, window_bounds = array<i64: 1, 8, 2>}, {transform_indices = @transform_2, window_bounds = array<i64: 1, 2, 8>}, {pipeline_mode = #tpu.pipeline_mode<synchronous>, transform_indices = @transform_3, window_bounds = array<i64: 32, 96>}, {pipeline_mode = #tpu.pipeline_mode<synchronous>, transform_indices = @transform_4, window_bounds = array<i64: 1, 96>}, {pipeline_mode = #tpu.pipeline_mode<synchronous>, transform_indices = @transform_5, window_bounds = array<i64: 32, 32>}, {pipeline_mode = #tpu.pipeline_mode<synchronous>, transform_indices = @transform_6, window_bounds = array<i64: 1, 32>}, {pipeline_mode = #tpu.pipeline_mode<synchronous>, transform_indices = @transform_7, window_bounds = array<i64: 1, 32>}, {pipeline_mode = #tpu.pipeline_mode<synchronous>, transform_indices = @transform_8, window_bounds = array<i64: 1, 32>}, {pipeline_mode = #tpu.pipeline_mode<synchronous>, transform_indices = @transform_9, window_bounds = array<i64: 32, 64>}, {pipeline_mode = #tpu.pipeline_mode<synchronous>, transform_indices = @transform_10, window_bounds = array<i64: 1, 64>}, {pipeline_mode = #tpu.pipeline_mode<synchronous>, transform_indices = @transform_11, window_bounds = array<i64: 64, 32>}, {pipeline_mode = #tpu.pipeline_mode<synchronous>, transform_indices = @transform_12, window_bounds = array<i64: 1, 32>}, {pipeline_mode = #tpu.pipeline_mode<synchronous>, transform_indices = @transform_13, window_bounds = array<i64: 1, 32>}, {pipeline_mode = #tpu.pipeline_mode<synchronous>, transform_indices = @transform_14, window_bounds = array<i64: 1, 32>}, {transform_indices = @transform_15, window_bounds = array<i64: 1, 8, 32>}, {transform_indices = @transform_16, window_bounds = array<i64: 1, 1, 8>}]} {
    %c0_i32 = arith.constant 0 : i32
    %0 = arith.cmpi eq, %arg1, %c0_i32 : i32
    %1 = arith.extui %0 : i1 to i32
    %c0_i32_0 = arith.constant 0 : i32
    %2 = arith.cmpi ne, %1, %c0_i32_0 : i32
    scf.if %2 {
      %c0_84 = arith.constant 0 : index
      %c0_85 = arith.constant 0 : index
      %c0_86 = arith.constant 0 : index
      %195 = vector.load %arg2[%c0_84, %c0_85, %c0_86] : memref<1x8x32xbf16, #tpu.memory_space<vmem>>, vector<1x8x32xbf16>
      %196 = vector.shape_cast %195 : vector<1x8x32xbf16> to vector<8x32xbf16>
      %c0_87 = arith.constant 0 : index
      %c0_88 = arith.constant 0 : index
      %197 = vector.load %arg5[%c0_87, %c0_88] : memref<32x96xbf16, #tpu.memory_space<vmem>>, vector<32x96xbf16>
      %cst_89 = arith.constant dense<0.000000e+00> : vector<8x96xf32>
      %198 = tpu.matmul %196, %197, %cst_89 {dimension_numbers = #tpu.dot_dimension_numbers<[1], [0], [0], [1], [0, 0, 1, 1], [], []>} : vector<8x32xbf16>, vector<32x96xbf16>, vector<8x96xf32> -> vector<8x96xf32>
      %c0_90 = arith.constant 0 : index
      %c0_91 = arith.constant 0 : index
      %199 = vector.load %arg6[%c0_90, %c0_91] : memref<1x96xf32, #tpu.memory_space<vmem>>, vector<1x96xf32>
      %200 = vector.broadcast %199 : vector<1x96xf32> to vector<8x96xf32>
      %201 = arith.addf %198, %200 : vector<8x96xf32>
      %202 = arith.truncf %201 : vector<8x96xf32> to vector<8x96xbf16>
      %c0_92 = arith.constant 0 : index
      %c0_93 = arith.constant 0 : index
      %203 = vector.load %arg19[%c0_92, %c0_93] : memref<8x96xbf16, #tpu.memory_space<vmem>>, vector<8x96xbf16>
      tpu.vector_store %arg19[%c0_92, %c0_93], %202 {strides = array<i32>} : memref<8x96xbf16, #tpu.memory_space<vmem>>, vector<8x96xbf16>,
      %cst_94 = arith.constant 0.000000e+00 : f32
      %204 = vector.broadcast %cst_94 : f32 to vector<1x8xf32>
      %c0_95 = arith.constant 0 : index
      %c0_96 = arith.constant 0 : index
      %205 = vector.load %arg21[%c0_95, %c0_96] : memref<1x8xf32, #tpu.memory_space<vmem>>, vector<1x8xf32>
      tpu.vector_store %arg21[%c0_95, %c0_96], %204 {strides = array<i32>} : memref<1x8xf32, #tpu.memory_space<vmem>>, vector<1x8xf32>,
    } else {
    }
    %c8_i32 = arith.constant 8 : i32
    %3 = arith.muli %arg1, %c8_i32 : i32
    %4 = tpu.assume_multiple %3, 8 : i32
    %5 = tpu.iota {dimensions = array<i32: 1>} : vector<8x8xi32>
    %c0 = arith.constant 0 : index
    %c0_1 = arith.constant 0 : index
    %c0_2 = arith.constant 0 : index
    %6 = vector.load %arg3[%c0, %c0_1, %c0_2] : memref<1x8x2xi32, #tpu.memory_space<vmem>>, vector<1x8x1xi32>
    %7 = vector.shape_cast %6 : vector<1x8x1xi32> to vector<8x1xi32>
    %c0_3 = arith.constant 0 : index
    %c0_4 = arith.constant 0 : index
    %c1 = arith.constant 1 : index
    %8 = vector.load %arg3[%c0_3, %c0_4, %c1] : memref<1x8x2xi32, #tpu.memory_space<vmem>>, vector<1x8x1xi32>
    %9 = vector.shape_cast %8 : vector<1x8x1xi32> to vector<8x1xi32>
    %10 = vector.broadcast %7 : vector<8x1xi32> to vector<8x8xi32>
    %11 = arith.cmpi sge, %5, %10 : vector<8x8xi32>
    %12 = vector.broadcast %9 : vector<8x1xi32> to vector<8x8xi32>
    %13 = arith.cmpi slt, %5, %12 : vector<8x8xi32>
    %14 = arith.andi %11, %13 : vector<8x8xi1>
    %15 = arith.index_cast %4 : i32 to index
    %c0_5 = arith.constant 0 : index
    %16 = vector.load %arg19[%15, %c0_5] : memref<8x96xbf16, #tpu.memory_space<vmem>>, vector<8x32xbf16>
    %c0_6 = arith.constant 0 : index
    %c32 = arith.constant 32 : index
    %17 = vector.load %arg19[%c0_6, %c32] : memref<8x96xbf16, #tpu.memory_space<vmem>>, vector<8x32xbf16>
    %c0_7 = arith.constant 0 : index
    %c64 = arith.constant 64 : index
    %18 = vector.load %arg19[%c0_7, %c64] : memref<8x96xbf16, #tpu.memory_space<vmem>>, vector<8x32xbf16>
    %cst = arith.constant 0.000000e+00 : f32
    %19 = vector.broadcast %cst : f32 to vector<1x8xf32>
    %20 = vector.extract_strided_slice %16 {offsets = [0, 0], sizes = [8, 8], strides = [1, 1]} : vector<8x32xbf16> to vector<8x8xbf16>
    %21 = vector.extract_strided_slice %17 {offsets = [0, 0], sizes = [8, 8], strides = [1, 1]} : vector<8x32xbf16> to vector<8x8xbf16>
    %cst_8 = arith.constant dense<0.000000e+00> : vector<8x8xf32>
    %22 = tpu.matmul %20, %21, %cst_8 {dimension_numbers = #tpu.dot_dimension_numbers<[1], [1], [0], [0], [0, 0, 1, 0], [], []>} : vector<8x8xbf16>, vector<8x8xbf16>, vector<8x8xf32> -> vector<8x8xf32>
    %cst_9 = arith.constant -1.000000e+30 : f32
    %23 = vector.broadcast %cst_9 : f32 to vector<8x8xf32>
    %24 = arith.select %14, %22, %23 : vector<8x8xi1>, vector<8x8xf32>
    %cst_10 = arith.constant dense<0xFF800000> : vector<8xf32>
    %25 = vector.multi_reduction <maximumf>, %24, %cst_10 [1] : vector<8x8xf32> to vector<8xf32>
    %26 = vector.shape_cast %25 : vector<8xf32> to vector<8x1xf32>
    %27 = vector.broadcast %26 : vector<8x1xf32> to vector<8x8xf32>
    %28 = arith.subf %24, %27 : vector<8x8xf32>
    %29 = math.exp %28 : vector<8x8xf32>
    %cst_11 = arith.constant dense<0.000000e+00> : vector<8xf32>
    %30 = vector.multi_reduction <add>, %29, %cst_11 [1] : vector<8x8xf32> to vector<8xf32>
    %31 = vector.shape_cast %30 : vector<8xf32> to vector<8x1xf32>
    %32 = tpu.reciprocal %31 {approx = true} : vector<8x1xf32> -> vector<8x1xf32>
    %33 = vector.broadcast %32 : vector<8x1xf32> to vector<8x8xf32>
    %34 = arith.mulf %29, %33 : vector<8x8xf32>
    %cst_12 = arith.constant dense<0.000000e+00> : vector<8xf32>
    %35 = vector.multi_reduction <add>, %34, %cst_12 [0] : vector<8x8xf32> to vector<8xf32>
    %36 = vector.shape_cast %35 : vector<8xf32> to vector<1x8xf32>
    %37 = arith.addf %19, %36 : vector<1x8xf32>
    %38 = arith.truncf %34 : vector<8x8xf32> to vector<8x8xbf16>
    %39 = vector.extract_strided_slice %18 {offsets = [0, 0], sizes = [8, 8], strides = [1, 1]} : vector<8x32xbf16> to vector<8x8xbf16>
    %cst_13 = arith.constant dense<0.000000e+00> : vector<8x8xf32>
    %40 = tpu.matmul %38, %39, %cst_13 {dimension_numbers = #tpu.dot_dimension_numbers<[1], [0], [0], [1], [0, 0, 1, 1], [], []>} : vector<8x8xbf16>, vector<8x8xbf16>, vector<8x8xf32> -> vector<8x8xf32>
    %41 = arith.truncf %40 : vector<8x8xf32> to vector<8x8xbf16>
    %c0_14 = arith.constant 0 : index
    %c0_15 = arith.constant 0 : index
    %42 = vector.load %arg20[%c0_14, %c0_15] : memref<8x32xbf16, #tpu.memory_space<vmem>>, vector<8x8xbf16>
    tpu.vector_store %arg20[%c0_14, %c0_15], %41 {strides = array<i32>} : memref<8x32xbf16, #tpu.memory_space<vmem>>, vector<8x8xbf16>,
    %43 = vector.extract_strided_slice %16 {offsets = [0, 8], sizes = [8, 8], strides = [1, 1]} : vector<8x32xbf16> to vector<8x8xbf16>
    %44 = vector.extract_strided_slice %17 {offsets = [0, 8], sizes = [8, 8], strides = [1, 1]} : vector<8x32xbf16> to vector<8x8xbf16>
    %cst_16 = arith.constant dense<0.000000e+00> : vector<8x8xf32>
    %45 = tpu.matmul %43, %44, %cst_16 {dimension_numbers = #tpu.dot_dimension_numbers<[1], [1], [0], [0], [0, 0, 1, 0], [], []>} : vector<8x8xbf16>, vector<8x8xbf16>, vector<8x8xf32> -> vector<8x8xf32>
    %cst_17 = arith.constant -1.000000e+30 : f32
    %46 = vector.broadcast %cst_17 : f32 to vector<8x8xf32>
    %47 = arith.select %14, %45, %46 : vector<8x8xi1>, vector<8x8xf32>
    %cst_18 = arith.constant dense<0xFF800000> : vector<8xf32>
    %48 = vector.multi_reduction <maximumf>, %47, %cst_18 [1] : vector<8x8xf32> to vector<8xf32>
    %49 = vector.shape_cast %48 : vector<8xf32> to vector<8x1xf32>
    %50 = vector.broadcast %49 : vector<8x1xf32> to vector<8x8xf32>
    %51 = arith.subf %47, %50 : vector<8x8xf32>
    %52 = math.exp %51 : vector<8x8xf32>
    %cst_19 = arith.constant dense<0.000000e+00> : vector<8xf32>
    %53 = vector.multi_reduction <add>, %52, %cst_19 [1] : vector<8x8xf32> to vector<8xf32>
    %54 = vector.shape_cast %53 : vector<8xf32> to vector<8x1xf32>
    %55 = tpu.reciprocal %54 {approx = true} : vector<8x1xf32> -> vector<8x1xf32>
    %56 = vector.broadcast %55 : vector<8x1xf32> to vector<8x8xf32>
    %57 = arith.mulf %52, %56 : vector<8x8xf32>
    %cst_20 = arith.constant dense<0.000000e+00> : vector<8xf32>
    %58 = vector.multi_reduction <add>, %57, %cst_20 [0] : vector<8x8xf32> to vector<8xf32>
    %59 = vector.shape_cast %58 : vector<8xf32> to vector<1x8xf32>
    %60 = arith.addf %37, %59 : vector<1x8xf32>
    %61 = arith.truncf %57 : vector<8x8xf32> to vector<8x8xbf16>
    %62 = vector.extract_strided_slice %18 {offsets = [0, 8], sizes = [8, 8], strides = [1, 1]} : vector<8x32xbf16> to vector<8x8xbf16>
    %cst_21 = arith.constant dense<0.000000e+00> : vector<8x8xf32>
    %63 = tpu.matmul %61, %62, %cst_21 {dimension_numbers = #tpu.dot_dimension_numbers<[1], [0], [0], [1], [0, 0, 1, 1], [], []>} : vector<8x8xbf16>, vector<8x8xbf16>, vector<8x8xf32> -> vector<8x8xf32>
    %64 = arith.truncf %63 : vector<8x8xf32> to vector<8x8xbf16>
    %c0_22 = arith.constant 0 : index
    %c8 = arith.constant 8 : index
    %65 = vector.load %arg20[%c0_22, %c8] : memref<8x32xbf16, #tpu.memory_space<vmem>>, vector<8x8xbf16>
    tpu.vector_store %arg20[%c0_22, %c8], %64 {strides = array<i32>} : memref<8x32xbf16, #tpu.memory_space<vmem>>, vector<8x8xbf16>,
    %66 = vector.extract_strided_slice %16 {offsets = [0, 16], sizes = [8, 8], strides = [1, 1]} : vector<8x32xbf16> to vector<8x8xbf16>
    %67 = vector.extract_strided_slice %17 {offsets = [0, 16], sizes = [8, 8], strides = [1, 1]} : vector<8x32xbf16> to vector<8x8xbf16>
    %cst_23 = arith.constant dense<0.000000e+00> : vector<8x8xf32>
    %68 = tpu.matmul %66, %67, %cst_23 {dimension_numbers = #tpu.dot_dimension_numbers<[1], [1], [0], [0], [0, 0, 1, 0], [], []>} : vector<8x8xbf16>, vector<8x8xbf16>, vector<8x8xf32> -> vector<8x8xf32>
    %cst_24 = arith.constant -1.000000e+30 : f32
    %69 = vector.broadcast %cst_24 : f32 to vector<8x8xf32>
    %70 = arith.select %14, %68, %69 : vector<8x8xi1>, vector<8x8xf32>
    %cst_25 = arith.constant dense<0xFF800000> : vector<8xf32>
    %71 = vector.multi_reduction <maximumf>, %70, %cst_25 [1] : vector<8x8xf32> to vector<8xf32>
    %72 = vector.shape_cast %71 : vector<8xf32> to vector<8x1xf32>
    %73 = vector.broadcast %72 : vector<8x1xf32> to vector<8x8xf32>
    %74 = arith.subf %70, %73 : vector<8x8xf32>
    %75 = math.exp %74 : vector<8x8xf32>
    %cst_26 = arith.constant dense<0.000000e+00> : vector<8xf32>
    %76 = vector.multi_reduction <add>, %75, %cst_26 [1] : vector<8x8xf32> to vector<8xf32>
    %77 = vector.shape_cast %76 : vector<8xf32> to vector<8x1xf32>
    %78 = tpu.reciprocal %77 {approx = true} : vector<8x1xf32> -> vector<8x1xf32>
    %79 = vector.broadcast %78 : vector<8x1xf32> to vector<8x8xf32>
    %80 = arith.mulf %75, %79 : vector<8x8xf32>
    %cst_27 = arith.constant dense<0.000000e+00> : vector<8xf32>
    %81 = vector.multi_reduction <add>, %80, %cst_27 [0] : vector<8x8xf32> to vector<8xf32>
    %82 = vector.shape_cast %81 : vector<8xf32> to vector<1x8xf32>
    %83 = arith.addf %60, %82 : vector<1x8xf32>
    %84 = arith.truncf %80 : vector<8x8xf32> to vector<8x8xbf16>
    %85 = vector.extract_strided_slice %18 {offsets = [0, 16], sizes = [8, 8], strides = [1, 1]} : vector<8x32xbf16> to vector<8x8xbf16>
    %cst_28 = arith.constant dense<0.000000e+00> : vector<8x8xf32>
    %86 = tpu.matmul %84, %85, %cst_28 {dimension_numbers = #tpu.dot_dimension_numbers<[1], [0], [0], [1], [0, 0, 1, 1], [], []>} : vector<8x8xbf16>, vector<8x8xbf16>, vector<8x8xf32> -> vector<8x8xf32>
    %87 = arith.truncf %86 : vector<8x8xf32> to vector<8x8xbf16>
    %c0_29 = arith.constant 0 : index
    %c16 = arith.constant 16 : index
    %88 = vector.load %arg20[%c0_29, %c16] : memref<8x32xbf16, #tpu.memory_space<vmem>>, vector<8x8xbf16>
    tpu.vector_store %arg20[%c0_29, %c16], %87 {strides = array<i32>} : memref<8x32xbf16, #tpu.memory_space<vmem>>, vector<8x8xbf16>,
    %89 = vector.extract_strided_slice %16 {offsets = [0, 24], sizes = [8, 8], strides = [1, 1]} : vector<8x32xbf16> to vector<8x8xbf16>
    %90 = vector.extract_strided_slice %17 {offsets = [0, 24], sizes = [8, 8], strides = [1, 1]} : vector<8x32xbf16> to vector<8x8xbf16>
    %cst_30 = arith.constant dense<0.000000e+00> : vector<8x8xf32>
    %91 = tpu.matmul %89, %90, %cst_30 {dimension_numbers = #tpu.dot_dimension_numbers<[1], [1], [0], [0], [0, 0, 1, 0], [], []>} : vector<8x8xbf16>, vector<8x8xbf16>, vector<8x8xf32> -> vector<8x8xf32>
    %cst_31 = arith.constant -1.000000e+30 : f32
    %92 = vector.broadcast %cst_31 : f32 to vector<8x8xf32>
    %93 = arith.select %14, %91, %92 : vector<8x8xi1>, vector<8x8xf32>
    %cst_32 = arith.constant dense<0xFF800000> : vector<8xf32>
    %94 = vector.multi_reduction <maximumf>, %93, %cst_32 [1] : vector<8x8xf32> to vector<8xf32>
    %95 = vector.shape_cast %94 : vector<8xf32> to vector<8x1xf32>
    %96 = vector.broadcast %95 : vector<8x1xf32> to vector<8x8xf32>
    %97 = arith.subf %93, %96 : vector<8x8xf32>
    %98 = math.exp %97 : vector<8x8xf32>
    %cst_33 = arith.constant dense<0.000000e+00> : vector<8xf32>
    %99 = vector.multi_reduction <add>, %98, %cst_33 [1] : vector<8x8xf32> to vector<8xf32>
    %100 = vector.shape_cast %99 : vector<8xf32> to vector<8x1xf32>
    %101 = tpu.reciprocal %100 {approx = true} : vector<8x1xf32> -> vector<8x1xf32>
    %102 = vector.broadcast %101 : vector<8x1xf32> to vector<8x8xf32>
    %103 = arith.mulf %98, %102 : vector<8x8xf32>
    %cst_34 = arith.constant dense<0.000000e+00> : vector<8xf32>
    %104 = vector.multi_reduction <add>, %103, %cst_34 [0] : vector<8x8xf32> to vector<8xf32>
    %105 = vector.shape_cast %104 : vector<8xf32> to vector<1x8xf32>
    %106 = arith.addf %83, %105 : vector<1x8xf32>
    %107 = arith.truncf %103 : vector<8x8xf32> to vector<8x8xbf16>
    %108 = vector.extract_strided_slice %18 {offsets = [0, 24], sizes = [8, 8], strides = [1, 1]} : vector<8x32xbf16> to vector<8x8xbf16>
    %cst_35 = arith.constant dense<0.000000e+00> : vector<8x8xf32>
    %109 = tpu.matmul %107, %108, %cst_35 {dimension_numbers = #tpu.dot_dimension_numbers<[1], [0], [0], [1], [0, 0, 1, 1], [], []>} : vector<8x8xbf16>, vector<8x8xbf16>, vector<8x8xf32> -> vector<8x8xf32>
    %110 = arith.truncf %109 : vector<8x8xf32> to vector<8x8xbf16>
    %c0_36 = arith.constant 0 : index
    %c24 = arith.constant 24 : index
    %111 = vector.load %arg20[%c0_36, %c24] : memref<8x32xbf16, #tpu.memory_space<vmem>>, vector<8x8xbf16>
    tpu.vector_store %arg20[%c0_36, %c24], %110 {strides = array<i32>} : memref<8x32xbf16, #tpu.memory_space<vmem>>, vector<8x8xbf16>,
    %c0_37 = arith.constant 0 : index
    %c0_38 = arith.constant 0 : index
    %112 = vector.load %arg21[%c0_37, %c0_38] : memref<1x8xf32, #tpu.memory_space<vmem>>, vector<1x8xf32>
    %113 = arith.addf %112, %106 : vector<1x8xf32>
    %c0_39 = arith.constant 0 : index
    %c0_40 = arith.constant 0 : index
    %114 = vector.load %arg21[%c0_39, %c0_40] : memref<1x8xf32, #tpu.memory_space<vmem>>, vector<1x8xf32>
    tpu.vector_store %arg21[%c0_39, %c0_40], %113 {strides = array<i32>} : memref<1x8xf32, #tpu.memory_space<vmem>>, vector<1x8xf32>,
    %c0_41 = arith.constant 0 : index
    %c0_42 = arith.constant 0 : index
    %115 = vector.load %arg20[%c0_41, %c0_42] : memref<8x32xbf16, #tpu.memory_space<vmem>>, vector<8x32xbf16>
    %c0_43 = arith.constant 0 : index
    %c0_44 = arith.constant 0 : index
    %116 = vector.load %arg7[%c0_43, %c0_44] : memref<32x32xbf16, #tpu.memory_space<vmem>>, vector<32x32xbf16>
    %cst_45 = arith.constant dense<0.000000e+00> : vector<8x32xf32>
    %117 = tpu.matmul %115, %116, %cst_45 {dimension_numbers = #tpu.dot_dimension_numbers<[1], [0], [0], [1], [0, 0, 1, 1], [], []>} : vector<8x32xbf16>, vector<32x32xbf16>, vector<8x32xf32> -> vector<8x32xf32>
    %c0_46 = arith.constant 0 : index
    %c0_47 = arith.constant 0 : index
    %118 = vector.load %arg8[%c0_46, %c0_47] : memref<1x32xf32, #tpu.memory_space<vmem>>, vector<1x32xf32>
    %119 = vector.broadcast %118 : vector<1x32xf32> to vector<8x32xf32>
    %120 = arith.addf %117, %119 : vector<8x32xf32>
    %c0_48 = arith.constant 0 : index
    %121 = arith.index_cast %4 : i32 to index
    %c0_49 = arith.constant 0 : index
    %122 = vector.load %arg2[%c0_48, %121, %c0_49] : memref<1x8x32xbf16, #tpu.memory_space<vmem>>, vector<1x8x32xbf16>
    %123 = vector.shape_cast %122 : vector<1x8x32xbf16> to vector<8x32xbf16>
    %124 = arith.extf %123 : vector<8x32xbf16> to vector<8x32xf32>
    %125 = arith.addf %124, %120 : vector<8x32xf32>
    %cst_50 = arith.constant dense<0.000000e+00> : vector<8xf32>
    %126 = vector.multi_reduction <add>, %125, %cst_50 [1] : vector<8x32xf32> to vector<8xf32>
    %127 = vector.shape_cast %126 : vector<8xf32> to vector<8x1xf32>
    %cst_51 = arith.constant 3.200000e+01 : f32
    %128 = vector.broadcast %cst_51 : f32 to vector<8x1xf32>
    %129 = arith.divf %127, %128 : vector<8x1xf32>
    %130 = vector.broadcast %129 : vector<8x1xf32> to vector<8x32xf32>
    %131 = arith.subf %125, %130 : vector<8x32xf32>
    %132 = arith.mulf %131, %131 : vector<8x32xf32>
    %cst_52 = arith.constant dense<0.000000e+00> : vector<8xf32>
    %133 = vector.multi_reduction <add>, %132, %cst_52 [1] : vector<8x32xf32> to vector<8xf32>
    %134 = vector.shape_cast %133 : vector<8xf32> to vector<8x1xf32>
    %cst_53 = arith.constant 3.200000e+01 : f32
    %135 = vector.broadcast %cst_53 : f32 to vector<8x1xf32>
    %136 = arith.divf %134, %135 : vector<8x1xf32>
    %137 = vector.broadcast %129 : vector<8x1xf32> to vector<8x32xf32>
    %138 = arith.subf %125, %137 : vector<8x32xf32>
    %cst_54 = arith.constant 9.99999974E-6 : f32
    %139 = vector.broadcast %cst_54 : f32 to vector<8x1xf32>
    %140 = arith.addf %136, %139 : vector<8x1xf32>
    %141 = math.rsqrt %140 : vector<8x1xf32>
    %142 = vector.broadcast %141 : vector<8x1xf32> to vector<8x32xf32>
    %143 = arith.mulf %138, %142 : vector<8x32xf32>
    %c0_55 = arith.constant 0 : index
    %c0_56 = arith.constant 0 : index
    %144 = vector.load %arg9[%c0_55, %c0_56] : memref<1x32xf32, #tpu.memory_space<vmem>>, vector<1x32xf32>
    %145 = vector.broadcast %144 : vector<1x32xf32> to vector<8x32xf32>
    %146 = arith.mulf %143, %145 : vector<8x32xf32>
    %c0_57 = arith.constant 0 : index
    %c0_58 = arith.constant 0 : index
    %147 = vector.load %arg10[%c0_57, %c0_58] : memref<1x32xf32, #tpu.memory_space<vmem>>, vector<1x32xf32>
    %148 = vector.broadcast %147 : vector<1x32xf32> to vector<8x32xf32>
    %149 = arith.addf %146, %148 : vector<8x32xf32>
    %150 = arith.truncf %149 : vector<8x32xf32> to vector<8x32xbf16>
    %c0_59 = arith.constant 0 : index
    %c0_60 = arith.constant 0 : index
    %151 = vector.load %arg11[%c0_59, %c0_60] : memref<32x64xbf16, #tpu.memory_space<vmem>>, vector<32x64xbf16>
    %cst_61 = arith.constant dense<0.000000e+00> : vector<8x64xf32>
    %152 = tpu.matmul %150, %151, %cst_61 {dimension_numbers = #tpu.dot_dimension_numbers<[1], [0], [0], [1], [0, 0, 1, 1], [], []>} : vector<8x32xbf16>, vector<32x64xbf16>, vector<8x64xf32> -> vector<8x64xf32>
    %c0_62 = arith.constant 0 : index
    %c0_63 = arith.constant 0 : index
    %153 = vector.load %arg12[%c0_62, %c0_63] : memref<1x64xf32, #tpu.memory_space<vmem>>, vector<1x64xf32>
    %154 = vector.broadcast %153 : vector<1x64xf32> to vector<8x64xf32>
    %155 = arith.addf %152, %154 : vector<8x64xf32>
    %cst_64 = arith.constant 0.000000e+00 : f32
    %156 = vector.broadcast %cst_64 : f32 to vector<8x64xf32>
    %157 = arith.maximumf %155, %156 : vector<8x64xf32>
    %158 = arith.truncf %157 : vector<8x64xf32> to vector<8x64xbf16>
    %c0_65 = arith.constant 0 : index
    %c0_66 = arith.constant 0 : index
    %159 = vector.load %arg13[%c0_65, %c0_66] : memref<64x32xbf16, #tpu.memory_space<vmem>>, vector<64x32xbf16>
    %cst_67 = arith.constant dense<0.000000e+00> : vector<8x32xf32>
    %160 = tpu.matmul %158, %159, %cst_67 {dimension_numbers = #tpu.dot_dimension_numbers<[1], [0], [0], [1], [0, 0, 1, 1], [], []>} : vector<8x64xbf16>, vector<64x32xbf16>, vector<8x32xf32> -> vector<8x32xf32>
    %c0_68 = arith.constant 0 : index
    %c0_69 = arith.constant 0 : index
    %161 = vector.load %arg14[%c0_68, %c0_69] : memref<1x32xf32, #tpu.memory_space<vmem>>, vector<1x32xf32>
    %162 = vector.broadcast %161 : vector<1x32xf32> to vector<8x32xf32>
    %163 = arith.addf %160, %162 : vector<8x32xf32>
    %164 = arith.addf %149, %163 : vector<8x32xf32>
    %cst_70 = arith.constant dense<0.000000e+00> : vector<8xf32>
    %165 = vector.multi_reduction <add>, %164, %cst_70 [1] : vector<8x32xf32> to vector<8xf32>
    %166 = vector.shape_cast %165 : vector<8xf32> to vector<8x1xf32>
    %cst_71 = arith.constant 3.200000e+01 : f32
    %167 = vector.broadcast %cst_71 : f32 to vector<8x1xf32>
    %168 = arith.divf %166, %167 : vector<8x1xf32>
    %169 = vector.broadcast %168 : vector<8x1xf32> to vector<8x32xf32>
    %170 = arith.subf %164, %169 : vector<8x32xf32>
    %171 = arith.mulf %170, %170 : vector<8x32xf32>
    %cst_72 = arith.constant dense<0.000000e+00> : vector<8xf32>
    %172 = vector.multi_reduction <add>, %171, %cst_72 [1] : vector<8x32xf32> to vector<8xf32>
    %173 = vector.shape_cast %172 : vector<8xf32> to vector<8x1xf32>
    %cst_73 = arith.constant 3.200000e+01 : f32
    %174 = vector.broadcast %cst_73 : f32 to vector<8x1xf32>
    %175 = arith.divf %173, %174 : vector<8x1xf32>
    %176 = vector.broadcast %168 : vector<8x1xf32> to vector<8x32xf32>
    %177 = arith.subf %164, %176 : vector<8x32xf32>
    %cst_74 = arith.constant 9.99999974E-6 : f32
    %178 = vector.broadcast %cst_74 : f32 to vector<8x1xf32>
    %179 = arith.addf %175, %178 : vector<8x1xf32>
    %180 = math.rsqrt %179 : vector<8x1xf32>
    %181 = vector.broadcast %180 : vector<8x1xf32> to vector<8x32xf32>
    %182 = arith.mulf %177, %181 : vector<8x32xf32>
    %c0_75 = arith.constant 0 : index
    %c0_76 = arith.constant 0 : index
    %183 = vector.load %arg15[%c0_75, %c0_76] : memref<1x32xf32, #tpu.memory_space<vmem>>, vector<1x32xf32>
    %184 = vector.broadcast %183 : vector<1x32xf32> to vector<8x32xf32>
    %185 = arith.mulf %182, %184 : vector<8x32xf32>
    %c0_77 = arith.constant 0 : index
    %c0_78 = arith.constant 0 : index
    %186 = vector.load %arg16[%c0_77, %c0_78] : memref<1x32xf32, #tpu.memory_space<vmem>>, vector<1x32xf32>
    %187 = vector.broadcast %186 : vector<1x32xf32> to vector<8x32xf32>
    %188 = arith.addf %185, %187 : vector<8x32xf32>
    %c0_79 = arith.constant 0 : index
    %c0_80 = arith.constant 0 : index
    %c0_81 = arith.constant 0 : index
    %189 = vector.load %arg17[%c0_79, %c0_80, %c0_81] : memref<1x8x32xf32, #tpu.memory_space<vmem>>, vector<1x8x32xf32>
    %190 = vector.shape_cast %189 : vector<1x8x32xf32> to vector<8x32xf32>
    %191 = vector.shape_cast %188 : vector<8x32xf32> to vector<1x8x32xf32>
    tpu.vector_store %arg17[%c0_79, %c0_80, %c0_81], %191 {strides = array<i32>} : memref<1x8x32xf32, #tpu.memory_space<vmem>>, vector<1x8x32xf32>,
    %c0_i32_82 = arith.constant 0 : i32
    %192 = arith.cmpi eq, %arg1, %c0_i32_82 : i32
    %193 = arith.extui %192 : i1 to i32
    %c0_i32_83 = arith.constant 0 : i32
    %194 = arith.cmpi ne, %193, %c0_i32_83 : i32
    scf.if %194 {
      %c0_84 = arith.constant 0 : index
      %c0_85 = arith.constant 0 : index
      %c0_86 = arith.constant 0 : index
      %195 = vector.load %arg4[%c0_84, %c0_85, %c0_86] : memref<1x2x8xbf16, #tpu.memory_space<vmem>>, vector<1x2x8xbf16>
      %196 = vector.shape_cast %195 : vector<1x2x8xbf16> to vector<2x8xbf16>
      %197 = arith.extf %196 : vector<2x8xbf16> to vector<2x8xf32>
      %c0_87 = arith.constant 0 : index
      %c0_88 = arith.constant 0 : index
      %198 = vector.load %arg21[%c0_87, %c0_88] : memref<1x8xf32, #tpu.memory_space<vmem>>, vector<1x8xf32>
      %cst_89 = arith.constant 2.500000e-01 : f32
      %199 = vector.broadcast %cst_89 : f32 to vector<1x8xf32>
      %200 = arith.mulf %198, %199 : vector<1x8xf32>
      %201 = vector.broadcast %200 : vector<1x8xf32> to vector<2x8xf32>
      %202 = arith.mulf %201, %197 : vector<2x8xf32>
      %cst_90 = arith.constant 1.000000e+00 : f32
      %203 = vector.broadcast %cst_90 : f32 to vector<2x8xf32>
      %204 = arith.subf %203, %197 : vector<2x8xf32>
      %cst_91 = arith.constant -1.000000e+10 : f32
      %205 = vector.broadcast %cst_91 : f32 to vector<2x8xf32>
      %206 = arith.mulf %204, %205 : vector<2x8xf32>
      %207 = arith.addf %202, %206 : vector<2x8xf32>
      %cst_92 = arith.constant dense<0xFF800000> : vector<2xf32>
      %208 = vector.multi_reduction <maximumf>, %207, %cst_92 [1] : vector<2x8xf32> to vector<2xf32>
      %209 = vector.shape_cast %208 : vector<2xf32> to vector<2x1xf32>
      %210 = vector.broadcast %209 : vector<2x1xf32> to vector<2x8xf32>
      %211 = arith.subf %207, %210 : vector<2x8xf32>
      %212 = math.exp %211 : vector<2x8xf32>
      %cst_93 = arith.constant dense<0.000000e+00> : vector<2xf32>
      %213 = vector.multi_reduction <add>, %212, %cst_93 [1] : vector<2x8xf32> to vector<2xf32>
      %214 = vector.shape_cast %213 : vector<2xf32> to vector<2x1xf32>
      %215 = tpu.reciprocal %214 {approx = true} : vector<2x1xf32> -> vector<2x1xf32>
      %216 = vector.broadcast %215 : vector<2x1xf32> to vector<2x8xf32>
      %217 = arith.mulf %212, %216 : vector<2x8xf32>
      %218 = arith.mulf %217, %197 : vector<2x8xf32>
      %219 = arith.cmpf one, %218, %218 : vector<2x8xf32>
      %cst_94 = arith.constant 0.000000e+00 : f32
      %220 = vector.broadcast %cst_94 : f32 to vector<2x8xf32>
      %221 = arith.select %219, %220, %218 : vector<2x8xi1>, vector<2x8xf32>
      %cst_95 = arith.constant dense<0.000000e+00> : vector<8xf32>
      %222 = vector.multi_reduction <add>, %221, %cst_95 [0] : vector<2x8xf32> to vector<8xf32>
      %223 = vector.shape_cast %222 : vector<8xf32> to vector<1x8xf32>
      %c0_96 = arith.constant 0 : index
      %c0_97 = arith.constant 0 : index
      %c0_98 = arith.constant 0 : index
      %224 = vector.load %arg18[%c0_96, %c0_97, %c0_98] : memref<1x1x8xf32, #tpu.memory_space<vmem>>, vector<1x1x8xf32>
      %225 = vector.shape_cast %224 : vector<1x1x8xf32> to vector<1x8xf32>
      %226 = vector.shape_cast %223 : vector<1x8xf32> to vector<1x1x8xf32>
      tpu.vector_store %arg18[%c0_96, %c0_97, %c0_98], %226 {strides = array<i32>} : memref<1x1x8xf32, #tpu.memory_space<vmem>>, vector<1x1x8xf32>,
    } else {
    }
    return
  }
  func.func @transform_0(%arg0: i32, %arg1: i32) -> (i32, i32, i32) {
    %c0_i32 = arith.constant 0 : i32
    %c0_i32_0 = arith.constant 0 : i32
    %c0_i32_1 = arith.constant 0 : i32
    return %arg0, %c0_i32, %c0_i32_0 : i32, i32, i32
  }
  func.func @transform_1(%arg0: i32, %arg1: i32) -> (i32, i32, i32) {
    %c0_i32 = arith.constant 0 : i32
    %c0_i32_0 = arith.constant 0 : i32
    return %arg0, %arg1, %c0_i32 : i32, i32, i32
  }
  func.func @transform_2(%arg0: i32, %arg1: i32) -> (i32, i32, i32) {
    %c0_i32 = arith.constant 0 : i32
    %c0_i32_0 = arith.constant 0 : i32
    %c0_i32_1 = arith.constant 0 : i32
    return %arg0, %c0_i32, %c0_i32_0 : i32, i32, i32
  }
  func.func @transform_3(%arg0: i32, %arg1: i32) -> (i32, i32) {
    %c0_i32 = arith.constant 0 : i32
    %c0_i32_0 = arith.constant 0 : i32
    %c0_i32_1 = arith.constant 0 : i32
    return %c0_i32, %c0_i32_0 : i32, i32
  }
  func.func @transform_4(%arg0: i32, %arg1: i32) -> (i32, i32) {
    %c0_i32 = arith.constant 0 : i32
    %c0_i32_0 = arith.constant 0 : i32
    %c0_i32_1 = arith.constant 0 : i32
    return %c0_i32, %c0_i32_0 : i32, i32
  }
  func.func @transform_5(%arg0: i32, %arg1: i32) -> (i32, i32) {
    %c0_i32 = arith.constant 0 : i32
    %c0_i32_0 = arith.constant 0 : i32
    %c0_i32_1 = arith.constant 0 : i32
    return %c0_i32, %c0_i32_0 : i32, i32
  }
  func.func @transform_6(%arg0: i32, %arg1: i32) -> (i32, i32) {
    %c0_i32 = arith.constant 0 : i32
    %c0_i32_0 = arith.constant 0 : i32
    %c0_i32_1 = arith.constant 0 : i32
    return %c0_i32, %c0_i32_0 : i32, i32
  }
  func.func @transform_7(%arg0: i32, %arg1: i32) -> (i32, i32) {
    %c0_i32 = arith.constant 0 : i32
    %c0_i32_0 = arith.constant 0 : i32
    %c0_i32_1 = arith.constant 0 : i32
    return %c0_i32, %c0_i32_0 : i32, i32
  }
  func.func @transform_8(%arg0: i32, %arg1: i32) -> (i32, i32) {
    %c0_i32 = arith.constant 0 : i32
    %c0_i32_0 = arith.constant 0 : i32
    %c0_i32_1 = arith.constant 0 : i32
    return %c0_i32, %c0_i32_0 : i32, i32
  }
  func.func @transform_9(%arg0: i32, %arg1: i32) -> (i32, i32) {
    %c0_i32 = arith.constant 0 : i32
    %c0_i32_0 = arith.constant 0 : i32
    %c0_i32_1 = arith.constant 0 : i32
    return %c0_i32, %c0_i32_0 : i32, i32
  }
  func.func @transform_10(%arg0: i32, %arg1: i32) -> (i32, i32) {
    %c0_i32 = arith.constant 0 : i32
    %c0_i32_0 = arith.constant 0 : i32
    %c0_i32_1 = arith.constant 0 : i32
    return %c0_i32, %c0_i32_0 : i32, i32
  }
  func.func @transform_11(%arg0: i32, %arg1: i32) -> (i32, i32) {
    %c0_i32 = arith.constant 0 : i32
    %c0_i32_0 = arith.constant 0 : i32
    %c0_i32_1 = arith.constant 0 : i32
    return %c0_i32, %c0_i32_0 : i32, i32
  }
  func.func @transform_12(%arg0: i32, %arg1: i32) -> (i32, i32) {
    %c0_i32 = arith.constant 0 : i32
    %c0_i32_0 = arith.constant 0 : i32
    %c0_i32_1 = arith.constant 0 : i32
    return %c0_i32, %c0_i32_0 : i32, i32
  }
  func.func @transform_13(%arg0: i32, %arg1: i32) -> (i32, i32) {
    %c0_i32 = arith.constant 0 : i32
    %c0_i32_0 = arith.constant 0 : i32
    %c0_i32_1 = arith.constant 0 : i32
    return %c0_i32, %c0_i32_0 : i32, i32
  }
  func.func @transform_14(%arg0: i32, %arg1: i32) -> (i32, i32) {
    %c0_i32 = arith.constant 0 : i32
    %c0_i32_0 = arith.constant 0 : i32
    %c0_i32_1 = arith.constant 0 : i32
    return %c0_i32, %c0_i32_0 : i32, i32
  }
  func.func @transform_15(%arg0: i32, %arg1: i32) -> (i32, i32, i32) {
    %c0_i32 = arith.constant 0 : i32
    %c0_i32_0 = arith.constant 0 : i32
    return %arg0, %arg1, %c0_i32 : i32, i32, i32
  }
  func.func @transform_16(%arg0: i32, %arg1: i32) -> (i32, i32, i32) {
    %c0_i32 = arith.constant 0 : i32
    %c0_i32_0 = arith.constant 0 : i32
    %c0_i32_1 = arith.constant 0 : i32
    return %arg0, %c0_i32, %c0_i32_0 : i32, i32, i32
  }
}

</mosaic_0001>

<llo_original>
// kernel: tpu_custom_call.1
$region0: #{tpu_custom_call.1}
  #allocation0 [shape = 'u32[]', space=smem, size = 0x4, offset = 0x4, fixed_abs, tag = 'smem constant byte address 0x4 - core index']
  #allocation1 [shape = 'u32[72,128]{1,0:T(1,128)}', space=vmem, size = 0x9000, scoped, tag = 'internal scratch']
  #allocation2 [shape = 'bf16[8,96]{1,0:T(8,128)(2,1)}', space=vmem, size = 0x800, scoped, tag = 'scratch operand']
  #allocation3 [shape = 'bf16[8,32]{1,0:T(8,128)(2,1)}', space=vmem, size = 0x800, scoped, tag = 'scratch operand']
  #allocation4 [shape = 'f32[1,8]{1,0:T(1,128)}', space=vmem, size = 0x200, scoped, tag = 'scratch operand']
  %s0 = inlined_call_operand.vmem [shape: bf16[2,8,32], index: 0, kind: input, shape index: {}]
  %s1 = inlined_call_operand.vmem [shape: s32[2,8,2], index: 1, kind: input, shape index: {}]
  %s2 = inlined_call_operand.vmem [shape: bf16[2,2,8], index: 2, kind: input, shape index: {}]
  %s3 = inlined_call_operand.vmem [shape: bf16[32,96], index: 3, kind: input, shape index: {}]
  %s4 = inlined_call_operand.vmem [shape: f32[1,96], index: 4, kind: input, shape index: {}]
  %s5 = inlined_call_operand.vmem [shape: bf16[32,32], index: 5, kind: input, shape index: {}]
  %s6 = inlined_call_operand.vmem [shape: f32[1,32], index: 6, kind: input, shape index: {}]
  %s7 = inlined_call_operand.vmem [shape: f32[1,32], index: 7, kind: input, shape index: {}]
  %s8 = inlined_call_operand.vmem [shape: f32[1,32], index: 8, kind: input, shape index: {}]
  %s9 = inlined_call_operand.vmem [shape: bf16[32,64], index: 9, kind: input, shape index: {}]
  %s10 = inlined_call_operand.hbm [shape: f32[1,64], index: 10, kind: input, shape index: {}]
  %s11 = inlined_call_operand.vmem [shape: bf16[64,32], index: 11, kind: input, shape index: {}]
  %s12 = inlined_call_operand.vmem [shape: f32[1,32], index: 12, kind: input, shape index: {}]
  %s13 = inlined_call_operand.vmem [shape: f32[1,32], index: 13, kind: input, shape index: {}]
  %s14 = inlined_call_operand.vmem [shape: f32[1,32], index: 14, kind: input, shape index: {}]
  %s15 = inlined_call_operand.hbm [shape: f32[2,8,32], index: 15, kind: output, shape index: {0}]
  %s16 = inlined_call_operand.hbm [shape: f32[2,1,8], index: 16, kind: output, shape index: {1}]
  %17 = xla_tuple %s15, %s16
  %s18 = sld [smem:[#allocation0]]
  $region113: #{tpu_custom_call.1} parent=0
    _
  %s20 = ssub.s32 1, %s18
  %s21 = scalar_select 0, %s20, %s18
  $region1: #{tpu_custom_call.1} parent=0
    #allocation5 [shape = 'u8[512]{0}', space=vmem, size = 0x400, scoped, tag = 'input window, operand 10, single buffered']
    #allocation6 [shape = 's32[2]{0}', space=sflag, size = 0x8, scoped, tag = 'scoped memory for tpu_custom_call.1']
    #allocation7 [shape = 's32[2]{0}', space=sflag, size = 0x8, scoped, tag = 'scoped memory for tpu_custom_call.1']
    #allocation8 [shape = 'u8[8192]{0}', space=vmem, size = 0x2000, scoped, tag = 'output window, operand 0']
    #allocation9 [shape = 'u8[1024]{0}', space=vmem, size = 0x400, scoped, tag = 'output window, operand 1']
    #allocation10 [shape = 's32[2]{0}', space=sflag, size = 0x8, scoped, tag = 'scoped memory for tpu_custom_call.1']
    %22 = vsyncpa [#allocation6], 0
    %23 = vsyncpa [#allocation7], 0
    %s24 = scalar_lea.sflag [#allocation7], 1
    %25 = vsyncpa %s24, 0
    %26 = vsyncpa [#allocation10], 0
    %s27 = scalar_lea.sflag [#allocation10], 1
    %28 = vsyncpa %s27, 0
    loop: start=0, step=1, limit=4
    $region2: #{tpu_custom_call.1} parent=1 // loop_pre_header
      _
    $region3: #{tpu_custom_call.1} parent=1 // loop_header
      %s30 = sphi 0, %s34
      %p31 = scmp.ge.s32.totalorder %s30, 4
      %s37 = sphi 0, %s49
      %s38 = sphi 0, %s45
      %s39 = sphi 0, %s37
      %s40 = sphi 0, %s38
      %s41 = sphi 0, %s39
      %s42 = sphi 0, %s40
      %s52 = sphi 0, %s54
      %s55 = sphi 0, %s52
      %s56 = sphi 0, %s55
      %s72 = sphi 0, %s56
      %s80 = sphi 0, %s82
      %s83 = sphi 0, %s80
      %s84 = sphi 0, %s83
      %s100 = sphi 0, %s84
      %s106 = sphi 0, %s108
      %s109 = sphi 0, %s106
      %s110 = sphi 0, %s109
      %s126 = sphi 0, %s110
      %s130 = sphi 0, %s130
      %s132 = sphi 0, %s130
      %s133 = sphi 0, %s132
      %s147 = sphi 0, %s133
      %s151 = sphi 0, %s151
      %s153 = sphi 0, %s151
      %s154 = sphi 0, %s153
      %s168 = sphi 0, %s154
      %s172 = sphi 0, %s172
      %s174 = sphi 0, %s172
      %s175 = sphi 0, %s174
      %s189 = sphi 0, %s175
      %s193 = sphi 0, %s193
      %s195 = sphi 0, %s193
      %s196 = sphi 0, %s195
      %s210 = sphi 0, %s196
      %s214 = sphi 0, %s214
      %s216 = sphi 0, %s214
      %s217 = sphi 0, %s216
      %s231 = sphi 0, %s217
      %s235 = sphi 0, %s235
      %s237 = sphi 0, %s235
      %s238 = sphi 0, %s237
      %s252 = sphi 0, %s238
      %s256 = sphi 0, %s256
      %s258 = sphi 0, %s256
      %s259 = sphi 0, %s258
      %s273 = sphi 0, %s259
      %s277 = sphi 0, %s277
      %s279 = sphi 0, %s277
      %s280 = sphi 0, %s279
      %s294 = sphi 0, %s280
      %s298 = sphi 0, %s298
      %s300 = sphi 0, %s298
      %s301 = sphi 0, %s300
      %s315 = sphi 0, %s301
      %s319 = sphi 0, %s319
      %s321 = sphi 0, %s319
      %s322 = sphi 0, %s321
      %s336 = sphi 0, %s322
      %s340 = sphi 0, %s340
      %s342 = sphi 0, %s340
      %s343 = sphi 0, %s342
      %s357 = sphi 0, %s343
      %s361 = sphi 0, %s361
      %s363 = sphi 0, %s361
      %s364 = sphi 0, %s363
      %s378 = sphi 0, %s364
      %s386 = sphi 0, %s388
      %s389 = sphi 0, %s386
      %s390 = sphi 0, %s389
      %s406 = sphi 0, %s390
      %s412 = sphi 0, %s414
      %s415 = sphi 0, %s412
      %s416 = sphi 0, %s415
      %s432 = sphi 0, %s416
    $region4: #{tpu_custom_call.1} parent=1 // loop_header_branch
      %33 = sbr.rel (%p31) target = $region8
    $region5: #{tpu_custom_call.1} parent=1 // loop_body
      %s35 = ssub.s32 %s30, 1
      %s36 = ssub.s32 %s30, 2
      %s43 = sadd.s32 1, %s38
      %p44 = scmp.ge.s32.totalorder %s43, 1
      %s45 = scalar_select %p44, 0, %s43
      %s46 = sadd.s32 1, %s37
      %s47 = scalar_select %p44, %s46, %s37
      %p48 = scmp.ge.s32.totalorder %s47, 2
      %s49 = scalar_select %p48, 0, %s47
      %s50 = ssub.s32 %s37, %s49
      %p51 = scmp.eq.s32.totalorder %s50, 0
      %s53 = sadd.s32 %s52, 1
      %s54 = scalar_select %p51, %s52, %s53
      %p57 = pneg %p51
      %p58 = scmp.eq.s32.totalorder %s30, 1
      %p59 = por %p57, %p58
      %p60 = scmp.ne.s32.totalorder %s52, %s55
      %p61 = scmp.eq.s32.totalorder %s30, 0
      %p62 = por %p60, %p61
      %p63 = scmp.ne.s32.totalorder %s52, %s55
      %p64 = scmp.eq.s32.totalorder %s35, 1
      %p65 = por %p63, %p64
      %p66 = scmp.ne.s32.totalorder %s55, %s56
      %p67 = scmp.eq.s32.totalorder %s35, 0
      %p68 = por %p66, %p67
      %p69 = scmp.ne.s32.totalorder %s55, %s56
      %p70 = scmp.eq.s32.totalorder %s36, 1
      %p71 = por %p69, %p70
      %p73 = scmp.ne.s32.totalorder %s56, %s72
      %p74 = scmp.eq.s32.totalorder %s36, 0
      %p75 = por %p73, %p74
      %s76 = ssub.s32 %s37, %s49
      %s77 = ssub.s32 %s38, %s45
      %s78 = sor.u32 %s76, %s77
      %p79 = scmp.eq.s32.totalorder %s78, 0
      %s81 = sadd.s32 %s80, 1
      %s82 = scalar_select %p79, %s80, %s81
      %p85 = pneg %p79
      %p86 = scmp.eq.s32.totalorder %s30, 1
      %p87 = por %p85, %p86
      %p88 = scmp.ne.s32.totalorder %s80, %s83
      %p89 = scmp.eq.s32.totalorder %s30, 0
      %p90 = por %p88, %p89
      %p91 = scmp.ne.s32.totalorder %s80, %s83
      %p92 = scmp.eq.s32.totalorder %s35, 1
      %p93 = por %p91, %p92
      %p94 = scmp.ne.s32.totalorder %s83, %s84
      %p95 = scmp.eq.s32.totalorder %s35, 0
      %p96 = por %p94, %p95
      %p97 = scmp.ne.s32.totalorder %s83, %s84
      %p98 = scmp.eq.s32.totalorder %s36, 1
      %p99 = por %p97, %p98
      %p101 = scmp.ne.s32.totalorder %s84, %s100
      %p102 = scmp.eq.s32.totalorder %s36, 0
      %p103 = por %p101, %p102
      %s104 = ssub.s32 %s37, %s49
      %p105 = scmp.eq.s32.totalorder %s104, 0
      %s107 = sadd.s32 %s106, 1
      %s108 = scalar_select %p105, %s106, %s107
      %p111 = pneg %p105
      %p112 = scmp.eq.s32.totalorder %s30, 1
      %p113 = por %p111, %p112
      %p114 = scmp.ne.s32.totalorder %s106, %s109
      %p115 = scmp.eq.s32.totalorder %s30, 0
      %p116 = por %p114, %p115
      %p117 = scmp.ne.s32.totalorder %s106, %s109
      %p118 = scmp.eq.s32.totalorder %s35, 1
      %p119 = por %p117, %p118
      %p120 = scmp.ne.s32.totalorder %s109, %s110
      %p121 = scmp.eq.s32.totalorder %s35, 0
      %p122 = por %p120, %p121
      %p123 = scmp.ne.s32.totalorder %s109, %s110
      %p124 = scmp.eq.s32.totalorder %s36, 1
      %p125 = por %p123, %p124
      %p127 = scmp.ne.s32.totalorder %s110, %s126
      %p128 = scmp.eq.s32.totalorder %s36, 0
      %p129 = por %p127, %p128
      %s131 = sadd.s32 %s130, 1
      %p134 = scmp.eq.s32.totalorder %s30, 1
      %p135 = scmp.ne.s32.totalorder %s130, %s132
      %p136 = scmp.eq.s32.totalorder %s30, 0
      %p137 = por %p135, %p136
      %p138 = scmp.ne.s32.totalorder %s130, %s132
      %p139 = scmp.eq.s32.totalorder %s35, 1
      %p140 = por %p138, %p139
      %p141 = scmp.ne.s32.totalorder %s132, %s133
      %p142 = scmp.eq.s32.totalorder %s35, 0
      %p143 = por %p141, %p142
      %p144 = scmp.ne.s32.totalorder %s132, %s133
      %p145 = scmp.eq.s32.totalorder %s36, 1
      %p146 = por %p144, %p145
      %p148 = scmp.ne.s32.totalorder %s133, %s147
      %p149 = scmp.eq.s32.totalorder %s36, 0
      %p150 = por %p148, %p149
      %s152 = sadd.s32 %s151, 1
      %p155 = scmp.eq.s32.totalorder %s30, 1
      %p156 = scmp.ne.s32.totalorder %s151, %s153
      %p157 = scmp.eq.s32.totalorder %s30, 0
      %p158 = por %p156, %p157
      %p159 = scmp.ne.s32.totalorder %s151, %s153
      %p160 = scmp.eq.s32.totalorder %s35, 1
      %p161 = por %p159, %p160
      %p162 = scmp.ne.s32.totalorder %s153, %s154
      %p163 = scmp.eq.s32.totalorder %s35, 0
      %p164 = por %p162, %p163
      %p165 = scmp.ne.s32.totalorder %s153, %s154
      %p166 = scmp.eq.s32.totalorder %s36, 1
      %p167 = por %p165, %p166
      %p169 = scmp.ne.s32.totalorder %s154, %s168
      %p170 = scmp.eq.s32.totalorder %s36, 0
      %p171 = por %p169, %p170
      %s173 = sadd.s32 %s172, 1
      %p176 = scmp.eq.s32.totalorder %s30, 1
      %p177 = scmp.ne.s32.totalorder %s172, %s174
      %p178 = scmp.eq.s32.totalorder %s30, 0
      %p179 = por %p177, %p178
      %p180 = scmp.ne.s32.totalorder %s172, %s174
      %p181 = scmp.eq.s32.totalorder %s35, 1
      %p182 = por %p180, %p181
      %p183 = scmp.ne.s32.totalorder %s174, %s175
      %p184 = scmp.eq.s32.totalorder %s35, 0
      %p185 = por %p183, %p184
      %p186 = scmp.ne.s32.totalorder %s174, %s175
      %p187 = scmp.eq.s32.totalorder %s36, 1
      %p188 = por %p186, %p187
      %p190 = scmp.ne.s32.totalorder %s175, %s189
      %p191 = scmp.eq.s32.totalorder %s36, 0
      %p192 = por %p190, %p191
      %s194 = sadd.s32 %s193, 1
      %p197 = scmp.eq.s32.totalorder %s30, 1
      %p198 = scmp.ne.s32.totalorder %s193, %s195
      %p199 = scmp.eq.s32.totalorder %s30, 0
      %p200 = por %p198, %p199
      %p201 = scmp.ne.s32.totalorder %s193, %s195
      %p202 = scmp.eq.s32.totalorder %s35, 1
      %p203 = por %p201, %p202
      %p204 = scmp.ne.s32.totalorder %s195, %s196
      %p205 = scmp.eq.s32.totalorder %s35, 0
      %p206 = por %p204, %p205
      %p207 = scmp.ne.s32.totalorder %s195, %s196
      %p208 = scmp.eq.s32.totalorder %s36, 1
      %p209 = por %p207, %p208
      %p211 = scmp.ne.s32.totalorder %s196, %s210
      %p212 = scmp.eq.s32.totalorder %s36, 0
      %p213 = por %p211, %p212
      %s215 = sadd.s32 %s214, 1
      %p218 = scmp.eq.s32.totalorder %s30, 1
      %p219 = scmp.ne.s32.totalorder %s214, %s216
      %p220 = scmp.eq.s32.totalorder %s30, 0
      %p221 = por %p219, %p220
      %p222 = scmp.ne.s32.totalorder %s214, %s216
      %p223 = scmp.eq.s32.totalorder %s35, 1
      %p224 = por %p222, %p223
      %p225 = scmp.ne.s32.totalorder %s216, %s217
      %p226 = scmp.eq.s32.totalorder %s35, 0
      %p227 = por %p225, %p226
      %p228 = scmp.ne.s32.totalorder %s216, %s217
      %p229 = scmp.eq.s32.totalorder %s36, 1
      %p230 = por %p228, %p229
      %p232 = scmp.ne.s32.totalorder %s217, %s231
      %p233 = scmp.eq.s32.totalorder %s36, 0
      %p234 = por %p232, %p233
      %s236 = sadd.s32 %s235, 1
      %p239 = scmp.eq.s32.totalorder %s30, 1
      %p240 = scmp.ne.s32.totalorder %s235, %s237
      %p241 = scmp.eq.s32.totalorder %s30, 0
      %p242 = por %p240, %p241
      %p243 = scmp.ne.s32.totalorder %s235, %s237
      %p244 = scmp.eq.s32.totalorder %s35, 1
      %p245 = por %p243, %p244
      %p246 = scmp.ne.s32.totalorder %s237, %s238
      %p247 = scmp.eq.s32.totalorder %s35, 0
      %p248 = por %p246, %p247
      %p249 = scmp.ne.s32.totalorder %s237, %s238
      %p250 = scmp.eq.s32.totalorder %s36, 1
      %p251 = por %p249, %p250
      %p253 = scmp.ne.s32.totalorder %s238, %s252
      %p254 = scmp.eq.s32.totalorder %s36, 0
      %p255 = por %p253, %p254
      %s257 = sadd.s32 %s256, 1
      %p260 = scmp.eq.s32.totalorder %s30, 1
      %p261 = scmp.ne.s32.totalorder %s256, %s258
      %p262 = scmp.eq.s32.totalorder %s30, 0
      %p263 = por %p261, %p262
      %p264 = scmp.ne.s32.totalorder %s256, %s258
      %p265 = scmp.eq.s32.totalorder %s35, 1
      %p266 = por %p264, %p265
      %p267 = scmp.ne.s32.totalorder %s258, %s259
      %p268 = scmp.eq.s32.totalorder %s35, 0
      %p269 = por %p267, %p268
      %p270 = scmp.ne.s32.totalorder %s258, %s259
      %p271 = scmp.eq.s32.totalorder %s36, 1
      %p272 = por %p270, %p271
      %p274 = scmp.ne.s32.totalorder %s259, %s273
      %p275 = scmp.eq.s32.totalorder %s36, 0
      %p276 = por %p274, %p275
      %s278 = sadd.s32 %s277, 1
      %p281 = scmp.eq.s32.totalorder %s30, 1
      %p282 = scmp.ne.s32.totalorder %s277, %s279
      %p283 = scmp.eq.s32.totalorder %s30, 0
      %p284 = por %p282, %p283
      %p285 = scmp.ne.s32.totalorder %s277, %s279
      %p286 = scmp.eq.s32.totalorder %s35, 1
      %p287 = por %p285, %p286
      %p288 = scmp.ne.s32.totalorder %s279, %s280
      %p289 = scmp.eq.s32.totalorder %s35, 0
      %p290 = por %p288, %p289
      %p291 = scmp.ne.s32.totalorder %s279, %s280
      %p292 = scmp.eq.s32.totalorder %s36, 1
      %p293 = por %p291, %p292
      %p295 = scmp.ne.s32.totalorder %s280, %s294
      %p296 = scmp.eq.s32.totalorder %s36, 0
      %p297 = por %p295, %p296
      %s299 = sadd.s32 %s298, 1
      %p302 = scmp.eq.s32.totalorder %s30, 1
      %p303 = scmp.ne.s32.totalorder %s298, %s300
      %p304 = scmp.eq.s32.totalorder %s30, 0
      %p305 = por %p303, %p304
      %p306 = scmp.ne.s32.totalorder %s298, %s300
      %p307 = scmp.eq.s32.totalorder %s35, 1
      %p308 = por %p306, %p307
      %p309 = scmp.ne.s32.totalorder %s300, %s301
      %p310 = scmp.eq.s32.totalorder %s35, 0
      %p311 = por %p309, %p310
      %p312 = scmp.ne.s32.totalorder %s300, %s301
      %p313 = scmp.eq.s32.totalorder %s36, 1
      %p314 = por %p312, %p313
      %p316 = scmp.ne.s32.totalorder %s301, %s315
      %p317 = scmp.eq.s32.totalorder %s36, 0
      %p318 = por %p316, %p317
      %s320 = sadd.s32 %s319, 1
      %p323 = scmp.eq.s32.totalorder %s30, 1
      %p324 = scmp.ne.s32.totalorder %s319, %s321
      %p325 = scmp.eq.s32.totalorder %s30, 0
      %p326 = por %p324, %p325
      %p327 = scmp.ne.s32.totalorder %s319, %s321
      %p328 = scmp.eq.s32.totalorder %s35, 1
      %p329 = por %p327, %p328
      %p330 = scmp.ne.s32.totalorder %s321, %s322
      %p331 = scmp.eq.s32.totalorder %s35, 0
      %p332 = por %p330, %p331
      %p333 = scmp.ne.s32.totalorder %s321, %s322
      %p334 = scmp.eq.s32.totalorder %s36, 1
      %p335 = por %p333, %p334
      %p337 = scmp.ne.s32.totalorder %s322, %s336
      %p338 = scmp.eq.s32.totalorder %s36, 0
      %p339 = por %p337, %p338
      %s341 = sadd.s32 %s340, 1
      %p344 = scmp.eq.s32.totalorder %s30, 1
      %p345 = scmp.ne.s32.totalorder %s340, %s342
      %p346 = scmp.eq.s32.totalorder %s30, 0
      %p347 = por %p345, %p346
      %p348 = scmp.ne.s32.totalorder %s340, %s342
      %p349 = scmp.eq.s32.totalorder %s35, 1
      %p350 = por %p348, %p349
      %p351 = scmp.ne.s32.totalorder %s342, %s343
      %p352 = scmp.eq.s32.totalorder %s35, 0
      %p353 = por %p351, %p352
      %p354 = scmp.ne.s32.totalorder %s342, %s343
      %p355 = scmp.eq.s32.totalorder %s36, 1
      %p356 = por %p354, %p355
      %p358 = scmp.ne.s32.totalorder %s343, %s357
      %p359 = scmp.eq.s32.totalorder %s36, 0
      %p360 = por %p358, %p359
      %s362 = sadd.s32 %s361, 1
      %p365 = scmp.eq.s32.totalorder %s30, 1
      %p366 = scmp.ne.s32.totalorder %s361, %s363
      %p367 = scmp.eq.s32.totalorder %s30, 0
      %p368 = por %p366, %p367
      %p369 = scmp.ne.s32.totalorder %s361, %s363
      %p370 = scmp.eq.s32.totalorder %s35, 1
      %p371 = por %p369, %p370
      %p372 = scmp.ne.s32.totalorder %s363, %s364
      %p373 = scmp.eq.s32.totalorder %s35, 0
      %p374 = por %p372, %p373
      %p375 = scmp.ne.s32.totalorder %s363, %s364
      %p376 = scmp.eq.s32.totalorder %s36, 1
      %p377 = por %p375, %p376
      %p379 = scmp.ne.s32.totalorder %s364, %s378
      %p380 = scmp.eq.s32.totalorder %s36, 0
      %p381 = por %p379, %p380
      %s382 = ssub.s32 %s37, %s49
      %s383 = ssub.s32 %s38, %s45
      %s384 = sor.u32 %s382, %s383
      %p385 = scmp.eq.s32.totalorder %s384, 0
      %s387 = sadd.s32 %s386, 1
      %s388 = scalar_select %p385, %s386, %s387
      %p391 = pneg %p385
      %p392 = scmp.eq.s32.totalorder %s30, 1
      %p393 = por %p391, %p392
      %p394 = scmp.ne.s32.totalorder %s386, %s389
      %p395 = scmp.eq.s32.totalorder %s30, 0
      %p396 = por %p394, %p395
      %p397 = scmp.ne.s32.totalorder %s386, %s389
      %p398 = scmp.eq.s32.totalorder %s35, 1
      %p399 = por %p397, %p398
      %p400 = scmp.ne.s32.totalorder %s389, %s390
      %p401 = scmp.eq.s32.totalorder %s35, 0
      %p402 = por %p400, %p401
      %p403 = scmp.ne.s32.totalorder %s389, %s390
      %p404 = scmp.eq.s32.totalorder %s36, 1
      %p405 = por %p403, %p404
      %p407 = scmp.ne.s32.totalorder %s390, %s406
      %p408 = scmp.eq.s32.totalorder %s36, 0
      %p409 = por %p407, %p408
      %s410 = ssub.s32 %s37, %s49
      %p411 = scmp.eq.s32.totalorder %s410, 0
      %s413 = sadd.s32 %s412, 1
      %s414 = scalar_select %p411, %s412, %s413
      %p417 = pneg %p411
      %p418 = scmp.eq.s32.totalorder %s30, 1
      %p419 = por %p417, %p418
      %p420 = scmp.ne.s32.totalorder %s412, %s415
      %p421 = scmp.eq.s32.totalorder %s30, 0
      %p422 = por %p420, %p421
      %p423 = scmp.ne.s32.totalorder %s412, %s415
      %p424 = scmp.eq.s32.totalorder %s35, 1
      %p425 = por %p423, %p424
      %p426 = scmp.ne.s32.totalorder %s415, %s416
      %p427 = scmp.eq.s32.totalorder %s35, 0
      %p428 = por %p426, %p427
      %p429 = scmp.ne.s32.totalorder %s415, %s416
      %p430 = scmp.eq.s32.totalorder %s36, 1
      %p431 = por %p429, %p430
      %p433 = scmp.ne.s32.totalorder %s416, %s432
      %p434 = scmp.eq.s32.totalorder %s36, 0
      %p435 = por %p433, %p434
      %p436 = scmp.le.s32.totalorder 1, %s30
      %p437 = scmp.lt.s32.totalorder %s30, 3
      %p438 = pnand %p436, %p437
      %p439 = pneg %p438
      // Predicated region
      $region9: #{tpu_custom_call.1} parent=5 // pred_check
        _
      $region10: #{tpu_custom_call.1} parent=5 // pred_check_branch
        %441 = sbr.rel (%p438) target = $region12
      $region11: #{tpu_custom_call.1} parent=5 // pred_region
        %s442 = ssub.s32 %s30, 1
        // Predicated region
        $region13: #{tpu_custom_call.1} parent=11 // pred_check
          %p443 = pneg %p143
        $region14: #{tpu_custom_call.1} parent=11 // pred_check_branch
          %445 = sbr.rel (%p443) target = $region16
        $region15: #{tpu_custom_call.1} parent=11 // pred_region
          _
        $region16: #{tpu_custom_call.1} parent=11 // pred_fallthru
          _
        // Predicated region
        $region17: #{tpu_custom_call.1} parent=11 // pred_check
          %p446 = pneg %p164
        $region18: #{tpu_custom_call.1} parent=11 // pred_check_branch
          %448 = sbr.rel (%p446) target = $region20
        $region19: #{tpu_custom_call.1} parent=11 // pred_region
          _
        $region20: #{tpu_custom_call.1} parent=11 // pred_fallthru
          _
        // Predicated region
        $region21: #{tpu_custom_call.1} parent=11 // pred_check
          %p449 = pneg %p185
        $region22: #{tpu_custom_call.1} parent=11 // pred_check_branch
          %451 = sbr.rel (%p449) target = $region24
        $region23: #{tpu_custom_call.1} parent=11 // pred_region
          _
        $region24: #{tpu_custom_call.1} parent=11 // pred_fallthru
          _
        // Predicated region
        $region25: #{tpu_custom_call.1} parent=11 // pred_check
          %p452 = pneg %p206
        $region26: #{tpu_custom_call.1} parent=11 // pred_check_branch
          %454 = sbr.rel (%p452) target = $region28
        $region27: #{tpu_custom_call.1} parent=11 // pred_region
          _
        $region28: #{tpu_custom_call.1} parent=11 // pred_fallthru
          _
        // Predicated region
        $region29: #{tpu_custom_call.1} parent=11 // pred_check
          %p455 = pneg %p227
        $region30: #{tpu_custom_call.1} parent=11 // pred_check_branch
          %457 = sbr.rel (%p455) target = $region32
        $region31: #{tpu_custom_call.1} parent=11 // pred_region
          _
        $region32: #{tpu_custom_call.1} parent=11 // pred_fallthru
          _
        // Predicated region
        $region33: #{tpu_custom_call.1} parent=11 // pred_check
          %p458 = pneg %p248
        $region34: #{tpu_custom_call.1} parent=11 // pred_check_branch
          %460 = sbr.rel (%p458) target = $region36
        $region35: #{tpu_custom_call.1} parent=11 // pred_region
          _
        $region36: #{tpu_custom_call.1} parent=11 // pred_fallthru
          _
        // Predicated region
        $region37: #{tpu_custom_call.1} parent=11 // pred_check
          %p461 = pneg %p269
        $region38: #{tpu_custom_call.1} parent=11 // pred_check_branch
          %463 = sbr.rel (%p461) target = $region40
        $region39: #{tpu_custom_call.1} parent=11 // pred_region
          _
        $region40: #{tpu_custom_call.1} parent=11 // pred_fallthru
          _
        // Predicated region
        $region41: #{tpu_custom_call.1} parent=11 // pred_check
          %p464 = pneg %p290
        $region42: #{tpu_custom_call.1} parent=11 // pred_check_branch
          %466 = sbr.rel (%p464) target = $region44
        $region43: #{tpu_custom_call.1} parent=11 // pred_region
          %468 = vsyncadd [#allocation6], 0
          %s470 = sshll.u32 %s10, 4
          %s471 = int_to_ptr.hbm [resolvable:$true] %s470
          %s472 = sshll.u32 [#allocation5], 4
          %s473 = int_to_ptr.vmem [resolvable:$true] %s472
          %475 = dma.hbm_to_vmem [thread:$0]  %s471, 16, %s473, [#allocation6]
        $region44: #{tpu_custom_call.1} parent=11 // pred_fallthru
          _
        // Predicated region
        $region45: #{tpu_custom_call.1} parent=11 // pred_check
          %p476 = pneg %p311
        $region46: #{tpu_custom_call.1} parent=11 // pred_check_branch
          %478 = sbr.rel (%p476) target = $region48
        $region47: #{tpu_custom_call.1} parent=11 // pred_region
          _
        $region48: #{tpu_custom_call.1} parent=11 // pred_fallthru
          _
        // Predicated region
        $region49: #{tpu_custom_call.1} parent=11 // pred_check
          %p479 = pneg %p332
        $region50: #{tpu_custom_call.1} parent=11 // pred_check_branch
          %481 = sbr.rel (%p479) target = $region52
        $region51: #{tpu_custom_call.1} parent=11 // pred_region
          _
        $region52: #{tpu_custom_call.1} parent=11 // pred_fallthru
          _
        // Predicated region
        $region53: #{tpu_custom_call.1} parent=11 // pred_check
          %p482 = pneg %p353
        $region54: #{tpu_custom_call.1} parent=11 // pred_check_branch
          %484 = sbr.rel (%p482) target = $region56
        $region55: #{tpu_custom_call.1} parent=11 // pred_region
          _
        $region56: #{tpu_custom_call.1} parent=11 // pred_fallthru
          _
        // Predicated region
        $region57: #{tpu_custom_call.1} parent=11 // pred_check
          %p485 = pneg %p374
        $region58: #{tpu_custom_call.1} parent=11 // pred_check_branch
          %487 = sbr.rel (%p485) target = $region60
        $region59: #{tpu_custom_call.1} parent=11 // pred_region
          _
        $region60: #{tpu_custom_call.1} parent=11 // pred_fallthru
          _
      $region12: #{tpu_custom_call.1} parent=5 // pred_fallthru
        _
      %p488 = scmp.lt.s32.totalorder %s30, 2
      // Predicated region
      $region61: #{tpu_custom_call.1} parent=5 // pred_check
        %p489 = pneg %p488
      $region62: #{tpu_custom_call.1} parent=5 // pred_check_branch
        %491 = sbr.rel (%p489) target = $region64
      $region63: #{tpu_custom_call.1} parent=5 // pred_region
        // Predicated region
        $region65: #{tpu_custom_call.1} parent=63 // pred_check
          %p492 = pneg %p62
        $region66: #{tpu_custom_call.1} parent=63 // pred_check_branch
          %494 = sbr.rel (%p492) target = $region68
        $region67: #{tpu_custom_call.1} parent=63 // pred_region
          %p495 = scmp.lt.s32.totalorder %s37, 1
          %s496 = scalar_select %p495, %s37, 1
          %s497 = smul.addr %s496, 4
          %s498 = scalar_lea.vmem %s0, %s497
        $region68: #{tpu_custom_call.1} parent=63 // pred_fallthru
          _
        // Predicated region
        $region69: #{tpu_custom_call.1} parent=63 // pred_check
          %p499 = pneg %p90
        $region70: #{tpu_custom_call.1} parent=63 // pred_check_branch
          %501 = sbr.rel (%p499) target = $region72
        $region71: #{tpu_custom_call.1} parent=63 // pred_region
          %p502 = scmp.lt.s32.totalorder %s37, 1
          %s503 = scalar_select %p502, %s37, 1
          %p504 = scmp.lt.s32.totalorder %s38, 0
          %s505 = scalar_select %p504, %s38, 0
          %s506 = sadd.s32 %s505, %s503
          %s507 = smul.addr %s506, 8
          %s508 = scalar_lea.vmem %s1, %s507
        $region72: #{tpu_custom_call.1} parent=63 // pred_fallthru
          _
        // Predicated region
        $region73: #{tpu_custom_call.1} parent=63 // pred_check
          %p509 = pneg %p116
        $region74: #{tpu_custom_call.1} parent=63 // pred_check_branch
          %511 = sbr.rel (%p509) target = $region76
        $region75: #{tpu_custom_call.1} parent=63 // pred_region
          %p512 = scmp.lt.s32.totalorder %s37, 1
          %s513 = scalar_select %p512, %s37, 1
          %s514 = scalar_lea.vmem %s2, %s513
        $region76: #{tpu_custom_call.1} parent=63 // pred_fallthru
          _
      $region64: #{tpu_custom_call.1} parent=5 // pred_fallthru
        _
      %p515 = scmp.le.s32.totalorder 1, %s30
      %p516 = scmp.lt.s32.totalorder %s30, 3
      %p517 = pnand %p515, %p516
      %p518 = pneg %p517
      // Predicated region
      $region77: #{tpu_custom_call.1} parent=5 // pred_check
        _
      $region78: #{tpu_custom_call.1} parent=5 // pred_check_branch
        %520 = sbr.rel (%p517) target = $region80
      $region79: #{tpu_custom_call.1} parent=5 // pred_region
        %s521 = ssub.s32 %s30, 1
        // Predicated region
        $region81: #{tpu_custom_call.1} parent=79 // pred_check
          %p522 = pneg %p290
        $region82: #{tpu_custom_call.1} parent=79 // pred_check_branch
          %524 = sbr.rel (%p522) target = $region84
        $region83: #{tpu_custom_call.1} parent=79 // pred_region
          %526 = dma.done [#allocation6], 16
        $region84: #{tpu_custom_call.1} parent=79 // pred_fallthru
          _
        %p527 = scmp.lt.s32.totalorder %s39, 1
        %s528 = scalar_select %p527, %s39, 1
        %s529 = smul.addr %s528, 4
        %s530 = scalar_lea.vmem %s0, %s529
        %p531 = pneg %p68
        %p532 = pneg %p65
        %p533 = scmp.lt.s32.totalorder %s39, 1
        %s534 = scalar_select %p533, %s39, 1
        %p535 = scmp.lt.s32.totalorder %s40, 0
        %s536 = scalar_select %p535, %s40, 0
        %s537 = sadd.s32 %s536, %s534
        %s538 = smul.addr %s537, 8
        %s539 = scalar_lea.vmem %s1, %s538
        %p540 = pneg %p96
        %p541 = pneg %p93
        %p542 = scmp.lt.s32.totalorder %s39, 1
        %s543 = scalar_select %p542, %s39, 1
        %s544 = scalar_lea.vmem %s2, %s543
        %p545 = pneg %p122
        %p546 = pneg %p119
        %p547 = pneg %p143
        %p548 = pneg %p140
        %p549 = pneg %p164
        %p550 = pneg %p161
        %p551 = pneg %p185
        %p552 = pneg %p182
        %p553 = pneg %p206
        %p554 = pneg %p203
        %p555 = pneg %p227
        %p556 = pneg %p224
        %p557 = pneg %p248
        %p558 = pneg %p245
        %p559 = pneg %p269
        %p560 = pneg %p266
        %p561 = pneg %p290
        %p562 = pneg %p287
        %p563 = pneg %p311
        %p564 = pneg %p308
        %p565 = pneg %p332
        %p566 = pneg %p329
        %p567 = pneg %p353
        %p568 = pneg %p350
        %p569 = pneg %p374
        %p570 = pneg %p371
        %p571 = pneg %p402
        %p572 = pneg %p399
        %s573 = sand.u32 %s389, 1
        %s574 = scalar_lea.sflag [#allocation7], %s573
        %s575 = sand.u32 %s389, 1
        %s576 = smul.addr %s575, 8
        %s577 = scalar_lea.vmem [#allocation8], %s576
        %p578 = pneg %p428
        %p579 = pneg %p425
        %s580 = sand.u32 %s415, 1
        %s581 = scalar_lea.sflag [#allocation10], %s580
        %s582 = sand.u32 %s415, 1
        %s583 = scalar_lea.vmem [#allocation9], %s582
        %p584 = scmp.lt.s32.totalorder %s39, 1
        %s585 = scalar_select %p584, %s39, 1
        %s586 = smul.addr %s585, 4
        %s587 = scalar_lea.vmem %s0, %s586
        %p588 = scmp.lt.s32.totalorder %s39, 1
        %s589 = scalar_select %p588, %s39, 1
        %p590 = scmp.lt.s32.totalorder %s40, 0
        %s591 = scalar_select %p590, %s40, 0
        %s592 = sadd.s32 %s591, %s589
        %s593 = smul.addr %s592, 8
        %s594 = scalar_lea.vmem %s1, %s593
        %p595 = scmp.lt.s32.totalorder %s39, 1
        %s596 = scalar_select %p595, %s39, 1
        %s597 = scalar_lea.vmem %s2, %s596
        %p599 = scmp.eq.s32.totalorder %s40, 0
        // Predicated region
        $region85: #{tpu_custom_call.1} parent=79 // pred_check
          %p600 = pneg %p599
        $region86: #{tpu_custom_call.1} parent=79 // pred_check_branch
          %602 = sbr.rel (%p600) target = $region88
        $region87: #{tpu_custom_call.1} parent=79 // pred_region
          %v603 = vld [vmem:[%s587] sm:$0xf]
          %v604 = vld [vmem:[%s3] sm:$0xf]
          %v605 = vld [vmem:[%s3 + $0x4] sm:$0xf]
          %v606 = vld [vmem:[%s3 + $0x8] sm:$0xf]
          %v607 = vld [vmem:[%s3 + $0xc] sm:$0xf]
          %v608 = vld [vmem:[%s4] sm:$0x1]
          %v610 = vperm.slane %v608, 0
          %v616 = vunpack.c.l.b16 %v604
          %v617 = vunpack.c.l.b16 %v605
          %v618 = vunpack.c.l.b16 %v606
          %v619 = vunpack.c.l.b16 %v607
          %v620 = vpack.c.b16 %v617, %v616
          %v621 = vpack.c.b16 %v619, %v618
          %vm624 = vcmask 261120
          %v626 = vsel %vm624, %v603, 0
          %628 = vmatpush.bf16.msra.mxu0 0
          %629 = vmatpush.bf16.msra.mxu0 0
          %630 = vmatpush.bf16.msra.mxu0 0
          %631 = vmatpush.bf16.msra.mxu0 0
          %632 = vmatpush.bf16.msra.mxu0 0
          %633 = vmatpush.bf16.msra.mxu0 0
          %634 = vmatpush.bf16.msra.mxu0 %v621
          %635 = vmatpush.bf16.msra.mxu0 %v620
          %636 = vmatmul.bf16.gmra.mxu0 %v626
          %v637 = vpop.f32.mrf.mxu0
          %v638 = vadd.f32 %v610, %v637
          %v639 = vpop.f32.mrf.mxu0
          %640 = vdwg.mxu0
          %v641 = vpack.c.bf16 %v638, %v638
          %vm642 = vcmask 781312
          %643 = vst.msk [vmem:[#allocation2] sm:$0xf] %vm642, %v641
          %vm644 = vcmask 57344
          %645 = vst.msk [vmem:[#allocation4] sm:$0x1] %vm644, 0.0
        $region88: #{tpu_custom_call.1} parent=79 // pred_fallthru
          _
        %s646 = smul.u32 %s40, 8
        %v647 = vlaneseq
        %v648 = vand.u32 %v647, 127
        %v649 = vld [vmem:[%s594] sm:$0xff]
        %650 = vset.pattern.permute.xlu0 0
        %651 = vperm.xlu0 %650, %v649
        %v652 = vpop.permute.xlu0 %651
        %vm653 = vcmp.ge.s32.totalorder %v648, %v652
        %654 = vset.pattern.permute.xlu0 1
        %655 = vperm.xlu0 %654, %v649
        %v656 = vpop.permute.xlu0 %655
        %vm657 = vcmp.lt.s32.totalorder %v648, %v656
        %vm658 = vmand %vm653, %vm657
        %s659 = sshra.s32 %s646, 3
        %s660 = sand.u32 %s646, 7
        %s661 = smul.addr %s659, 4
        %s662 = scalar_lea.vmem [#allocation2], %s661
        %v663 = vld [vmem:[%s662] sm:$0xf]
        %v664 = vld [vmem:[#allocation2] sm:$0xf]
        %v666 = vunpack.c.l.b16 %v664
        %v667 = vpack.c.b16 %v666, %v666
        %668 = vrot.lane.b32.xlu0 %v667, 96
        %v669 = vpop.permute.xlu0 %668
        %vm670 = vcmask 64512
        %v672 = vsel %vm670, %v663, 0
        %v675 = vsel %vm670, %v669, 0
        %677 = vmatpush.bf16.xpose.msra.mxu0 0
        %678 = vmatpush.bf16.xpose.msra.mxu0 0
        %679 = vmatpush.bf16.xpose.msra.mxu0 0
        %680 = vmatpush.bf16.xpose.msra.mxu0 0
        %681 = vmatpush.bf16.xpose.msra.mxu0 0
        %682 = vmatpush.bf16.xpose.msra.mxu0 0
        %683 = vmatpush.bf16.xpose.msra.mxu0 0
        %684 = vmatpush.bf16.xpose.msra.mxu0 %v675
        %685 = vmatmul.bf16.gmra.mxu0 %v672
        %v686 = vpop.f32.mrf.mxu0
        %v687 = vadd.f32 0.0, %v686
        %v688 = vpop.f32.mrf.mxu0
        %689 = vdwg.mxu0
        %v690 = vsel %vm658, %v687, -1e+30
        %v691 = vsel %vm670, %v690, -inf
        %692 = vmax.xlane.f32.xlu0 %v691
        %v693 = vpop.xlane.xlu0 %692
        %v694 = vsub.f32 %v690, %v693
        %v695 = vmul.f32 %v694, 1.442695
        %v696 = vpow.pop %v695
        %v697 = vsel %vm670, %v696, 0.0
        %698 = vadd.xlane.f32.xlu0 %v697
        %v699 = vpop.xlane.xlu0 %698
        %v700 = vrcp.pop %v699
        %v701 = vmul.f32 %v696, %v700
        %v702 = vsel %vm670, %v701, 0.0
        %v703 = vrot.slane %v702, 4
        %v704 = vadd.f32 %v702, %v703
        %v705 = vrot.slane %v704, 2
        %v706 = vadd.f32 %v704, %v705
        %v707 = vrot.slane %v706, 1
        %v708 = vadd.f32 %v706, %v707
        %v709 = vadd.f32 %v708, 0.0
        %v710 = vpack.c.bf16 %v701, %v701
        %711 = vrot.lane.b32.xlu0 %v667, 64
        %v712 = vpop.permute.xlu0 %711
        %v714 = vsel %vm670, %v710, 0
        %vm716 = vcmask 1043456
        %v718 = vsel %vm716, %v712, 0
        %720 = vmatpush.bf16.msra.mxu0 0
        %721 = vmatpush.bf16.msra.mxu0 0
        %722 = vmatpush.bf16.msra.mxu0 0
        %723 = vmatpush.bf16.msra.mxu0 0
        %724 = vmatpush.bf16.msra.mxu0 0
        %725 = vmatpush.bf16.msra.mxu0 0
        %726 = vmatpush.bf16.msra.mxu0 0
        %727 = vmatpush.bf16.msra.mxu0 %v718
        %728 = vmatmul.bf16.gmra.mxu0 %v714
        %v729 = vpop.f32.mrf.mxu0
        %v730 = vadd.f32 0.0, %v729
        %v731 = vpop.f32.mrf.mxu0
        %732 = vdwg.mxu0
        %v733 = vpack.c.bf16 %v730, %v730
        %vm734 = vcmask 60416
        %735 = vst.msk [vmem:[#allocation3] sm:$0xf] %vm734, %v733
        %v737 = vunpack.c.l.b16 %v663
        %v738 = vpack.c.b16 %v737, %v737
        %739 = vrot.lane.b32.xlu0 %v738, 120
        %v740 = vpop.permute.xlu0 %739
        %741 = vrot.lane.b32.xlu0 %v667, 88
        %v742 = vpop.permute.xlu0 %741
        %v744 = vsel %vm670, %v740, 0
        %v747 = vsel %vm670, %v742, 0
        %749 = vmatpush.bf16.xpose.msra.mxu0 0
        %750 = vmatpush.bf16.xpose.msra.mxu0 0
        %751 = vmatpush.bf16.xpose.msra.mxu0 0
        %752 = vmatpush.bf16.xpose.msra.mxu0 0
        %753 = vmatpush.bf16.xpose.msra.mxu0 0
        %754 = vmatpush.bf16.xpose.msra.mxu0 0
        %755 = vmatpush.bf16.xpose.msra.mxu0 0
        %756 = vmatpush.bf16.xpose.msra.mxu0 %v747
        %757 = vmatmul.bf16.gmra.mxu0 %v744
        %v758 = vpop.f32.mrf.mxu0
        %v759 = vadd.f32 0.0, %v758
        %v760 = vpop.f32.mrf.mxu0
        %761 = vdwg.mxu0
        %v762 = vsel %vm658, %v759, -1e+30
        %v763 = vsel %vm670, %v762, -inf
        %764 = vmax.xlane.f32.xlu0 %v763
        %v765 = vpop.xlane.xlu0 %764
        %v766 = vsub.f32 %v762, %v765
        %v767 = vmul.f32 %v766, 1.442695
        %v768 = vpow.pop %v767
        %v769 = vsel %vm670, %v768, 0.0
        %770 = vadd.xlane.f32.xlu0 %v769
        %v771 = vpop.xlane.xlu0 %770
        %v772 = vrcp.pop %v771
        %v773 = vmul.f32 %v768, %v772
        %v774 = vsel %vm670, %v773, 0.0
        %v775 = vrot.slane %v774, 4
        %v776 = vadd.f32 %v774, %v775
        %v777 = vrot.slane %v776, 2
        %v778 = vadd.f32 %v776, %v777
        %v779 = vrot.slane %v778, 1
        %v780 = vadd.f32 %v778, %v779
        %v781 = vadd.f32 %v709, %v780
        %v782 = vpack.c.bf16 %v773, %v773
        %783 = vrot.lane.b32.xlu0 %v667, 56
        %v784 = vpop.permute.xlu0 %783
        %v786 = vsel %vm670, %v782, 0
        %v789 = vsel %vm716, %v784, 0
        %791 = vmatpush.bf16.msra.mxu0 0
        %792 = vmatpush.bf16.msra.mxu0 0
        %793 = vmatpush.bf16.msra.mxu0 0
        %794 = vmatpush.bf16.msra.mxu0 0
        %795 = vmatpush.bf16.msra.mxu0 0
        %796 = vmatpush.bf16.msra.mxu0 0
        %797 = vmatpush.bf16.msra.mxu0 0
        %798 = vmatpush.bf16.msra.mxu0 %v789
        %799 = vmatmul.bf16.gmra.mxu0 %v786
        %v800 = vpop.f32.mrf.mxu0
        %v801 = vadd.f32 0.0, %v800
        %v802 = vpop.f32.mrf.mxu0
        %803 = vdwg.mxu0
        %v804 = vpack.c.bf16 %v801, %v801
        %806 = vrot.lane.b32.xlu0 %v804, 8
        %v807 = vpop.permute.xlu0 %806
        %vm809 = vcmask 126016
        %810 = vst.msk [vmem:[#allocation3] sm:$0xf] %vm809, %v807
        %811 = vrot.lane.b32.xlu0 %v738, 112
        %v812 = vpop.permute.xlu0 %811
        %813 = vrot.lane.b32.xlu0 %v667, 80
        %v814 = vpop.permute.xlu0 %813
        %v816 = vsel %vm670, %v812, 0
        %v819 = vsel %vm670, %v814, 0
        %821 = vmatpush.bf16.xpose.msra.mxu0 0
        %822 = vmatpush.bf16.xpose.msra.mxu0 0
        %823 = vmatpush.bf16.xpose.msra.mxu0 0
        %824 = vmatpush.bf16.xpose.msra.mxu0 0
        %825 = vmatpush.bf16.xpose.msra.mxu0 0
        %826 = vmatpush.bf16.xpose.msra.mxu0 0
        %827 = vmatpush.bf16.xpose.msra.mxu0 0
        %828 = vmatpush.bf16.xpose.msra.mxu0 %v819
        %829 = vmatmul.bf16.gmra.mxu0 %v816
        %v830 = vpop.f32.mrf.mxu0
        %v831 = vadd.f32 0.0, %v830
        %v832 = vpop.f32.mrf.mxu0
        %833 = vdwg.mxu0
        %v834 = vsel %vm658, %v831, -1e+30
        %v835 = vsel %vm670, %v834, -inf
        %836 = vmax.xlane.f32.xlu0 %v835
        %v837 = vpop.xlane.xlu0 %836
        %v838 = vsub.f32 %v834, %v837
        %v839 = vmul.f32 %v838, 1.442695
        %v840 = vpow.pop %v839
        %v841 = vsel %vm670, %v840, 0.0
        %842 = vadd.xlane.f32.xlu0 %v841
        %v843 = vpop.xlane.xlu0 %842
        %v844 = vrcp.pop %v843
        %v845 = vmul.f32 %v840, %v844
        %v846 = vsel %vm670, %v845, 0.0
        %v847 = vrot.slane %v846, 4
        %v848 = vadd.f32 %v846, %v847
        %v849 = vrot.slane %v848, 2
        %v850 = vadd.f32 %v848, %v849
        %v851 = vrot.slane %v850, 1
        %v852 = vadd.f32 %v850, %v851
        %v853 = vadd.f32 %v781, %v852
        %v854 = vpack.c.bf16 %v845, %v845
        %855 = vrot.lane.b32.xlu0 %v667, 48
        %v856 = vpop.permute.xlu0 %855
        %v858 = vsel %vm670, %v854, 0
        %v861 = vsel %vm716, %v856, 0
        %863 = vmatpush.bf16.msra.mxu0 0
        %864 = vmatpush.bf16.msra.mxu0 0
        %865 = vmatpush.bf16.msra.mxu0 0
        %866 = vmatpush.bf16.msra.mxu0 0
        %867 = vmatpush.bf16.msra.mxu0 0
        %868 = vmatpush.bf16.msra.mxu0 0
        %869 = vmatpush.bf16.msra.mxu0 0
        %870 = vmatpush.bf16.msra.mxu0 %v861
        %871 = vmatmul.bf16.gmra.mxu0 %v858
        %v872 = vpop.f32.mrf.mxu0
        %v873 = vadd.f32 0.0, %v872
        %v874 = vpop.f32.mrf.mxu0
        %875 = vdwg.mxu0
        %v876 = vpack.c.bf16 %v873, %v873
        %878 = vrot.lane.b32.xlu0 %v876, 16
        %v879 = vpop.permute.xlu0 %878
        %vm881 = vcmask 191616
        %882 = vst.msk [vmem:[#allocation3] sm:$0xf] %vm881, %v879
        %883 = vrot.lane.b32.xlu0 %v738, 104
        %v884 = vpop.permute.xlu0 %883
        %885 = vrot.lane.b32.xlu0 %v667, 72
        %v886 = vpop.permute.xlu0 %885
        %v888 = vsel %vm670, %v884, 0
        %v891 = vsel %vm670, %v886, 0
        %893 = vmatpush.bf16.xpose.msra.mxu0 0
        %894 = vmatpush.bf16.xpose.msra.mxu0 0
        %895 = vmatpush.bf16.xpose.msra.mxu0 0
        %896 = vmatpush.bf16.xpose.msra.mxu0 0
        %897 = vmatpush.bf16.xpose.msra.mxu0 0
        %898 = vmatpush.bf16.xpose.msra.mxu0 0
        %899 = vmatpush.bf16.xpose.msra.mxu0 0
        %900 = vmatpush.bf16.xpose.msra.mxu0 %v891
        %901 = vmatmul.bf16.gmra.mxu0 %v888
        %v902 = vpop.f32.mrf.mxu0
        %v903 = vadd.f32 0.0, %v902
        %v904 = vpop.f32.mrf.mxu0
        %905 = vdwg.mxu0
        %v906 = vsel %vm658, %v903, -1e+30
        %v907 = vsel %vm670, %v906, -inf
        %908 = vmax.xlane.f32.xlu0 %v907
        %v909 = vpop.xlane.xlu0 %908
        %v910 = vsub.f32 %v906, %v909
        %v911 = vmul.f32 %v910, 1.442695
        %v912 = vpow.pop %v911
        %v913 = vsel %vm670, %v912, 0.0
        %914 = vadd.xlane.f32.xlu0 %v913
        %v915 = vpop.xlane.xlu0 %914
        %v916 = vrcp.pop %v915
        %v917 = vmul.f32 %v912, %v916
        %v918 = vsel %vm670, %v917, 0.0
        %v919 = vrot.slane %v918, 4
        %v920 = vadd.f32 %v918, %v919
        %v921 = vrot.slane %v920, 2
        %v922 = vadd.f32 %v920, %v921
        %v923 = vrot.slane %v922, 1
        %v924 = vadd.f32 %v922, %v923
        %v925 = vadd.f32 %v853, %v924
        %v926 = vpack.c.bf16 %v917, %v917
        %927 = vrot.lane.b32.xlu0 %v667, 40
        %v928 = vpop.permute.xlu0 %927
        %v930 = vsel %vm670, %v926, 0
        %v933 = vsel %vm716, %v928, 0
        %935 = vmatpush.bf16.msra.mxu0 0
        %936 = vmatpush.bf16.msra.mxu0 0
        %937 = vmatpush.bf16.msra.mxu0 0
        %938 = vmatpush.bf16.msra.mxu0 0
        %939 = vmatpush.bf16.msra.mxu0 0
        %940 = vmatpush.bf16.msra.mxu0 0
        %941 = vmatpush.bf16.msra.mxu0 0
        %942 = vmatpush.bf16.msra.mxu0 %v933
        %943 = vmatmul.bf16.gmra.mxu0 %v930
        %v944 = vpop.f32.mrf.mxu0
        %v945 = vadd.f32 0.0, %v944
        %v946 = vpop.f32.mrf.mxu0
        %947 = vdwg.mxu0
        %v948 = vpack.c.bf16 %v945, %v945
        %950 = vrot.lane.b32.xlu0 %v948, 24
        %v951 = vpop.permute.xlu0 %950
        %vm953 = vcmask 257216
        %954 = vst.msk [vmem:[#allocation3] sm:$0xf] %vm953, %v951
        %v955 = vld [vmem:[#allocation4] sm:$0x1]
        %v956 = vadd.f32 %v955, %v925
        %vm957 = vcmask 57344
        %958 = vst.msk [vmem:[#allocation4] sm:$0x1] %vm957, %v956
        %v959 = vld [vmem:[#allocation3] sm:$0xf]
        %v960 = vld [vmem:[%s5] sm:$0xf]
        %v961 = vld [vmem:[%s5 + $0x4] sm:$0xf]
        %v962 = vld [vmem:[%s5 + $0x8] sm:$0xf]
        %v963 = vld [vmem:[%s5 + $0xc] sm:$0xf]
        %v964 = vld [vmem:[%s6] sm:$0x1]
        %v966 = vperm.slane %v964, 0
        %v972 = vunpack.c.l.b16 %v960
        %v973 = vunpack.c.l.b16 %v961
        %v974 = vunpack.c.l.b16 %v962
        %v975 = vunpack.c.l.b16 %v963
        %v976 = vpack.c.b16 %v973, %v972
        %v977 = vpack.c.b16 %v975, %v974
        %vm980 = vcmask 261120
        %v982 = vsel %vm980, %v959, 0
        %984 = vmatpush.bf16.msra.mxu0 0
        %985 = vmatpush.bf16.msra.mxu0 0
        %986 = vmatpush.bf16.msra.mxu0 0
        %987 = vmatpush.bf16.msra.mxu0 0
        %988 = vmatpush.bf16.msra.mxu0 0
        %989 = vmatpush.bf16.msra.mxu0 0
        %990 = vmatpush.bf16.msra.mxu0 %v977
        %991 = vmatpush.bf16.msra.mxu0 %v976
        %992 = vmatmul.bf16.gmra.mxu0 %v982
        %v993 = vpop.f32.mrf.mxu0
        %v994 = vadd.f32 %v966, %v993
        %v995 = vpop.f32.mrf.mxu0
        %996 = vdwg.mxu0
        %s997 = smul.addr %s659, 4
        %s998 = scalar_lea.vmem %s587, %s997
        %v999 = vld [vmem:[%s998] sm:$0xf]
        %v1000 = vunpack.c.l.bf16 %v999
        %v1001 = vadd.f32 %v1000, %v994
        %v1002 = vsel %vm980, %v1001, 0.0
        %1003 = vadd.xlane.f32.xlu0 %v1002
        %v1004 = vpop.xlane.xlu0 %1003
        %v1005 = vrcp.pop 32.0
        %v1006 = vmul.f32 32.0, %v1005
        %v1007 = vsub.f32 1.0, %v1006
        %v1008 = vmul.f32 %v1005, %v1007
        %v1009 = vadd.f32 %v1005, %v1008
        %vm1010 = vweird.f32 %v1005
        %v1011 = vsel %vm1010, %v1005, %v1009
        %v1012 = vmul.f32 %v1004, %v1011
        %v1013 = vsub.f32 %v1001, %v1012
        %v1014 = vmul.f32 %v1013, %v1013
        %v1015 = vsel %vm980, %v1014, 0.0
        %1016 = vadd.xlane.f32.xlu0 %v1015
        %v1017 = vpop.xlane.xlu0 %1016
        %v1018 = vmul.f32 %v1017, %v1011
        %v1019 = vadd.f32 %v1018, 1e-05
        %v1020 = vrsqrt.pop %v1019
        %v1021 = vmul.f32 %v1020, %v1019
        %v1022 = vmul.f32 %v1021, %v1020
        %v1023 = vmul.f32 0.5, %v1022
        %v1024 = vsub.f32 1.5, %v1023
        %v1025 = vmul.f32 %v1020, %v1024
        %vm1026 = vweird.f32 %v1019
        %vm1027 = vweird.f32 %v1020
        %vm1028 = vmor %vm1026, %vm1027
        %v1029 = vsel %vm1028, %v1020, %v1025
        %v1030 = vmul.f32 %v1013, %v1029
        %v1031 = vld [vmem:[%s7] sm:$0x1]
        %v1033 = vperm.slane %v1031, 0
        %v1035 = vmul.f32 %v1030, %v1033
        %v1036 = vld [vmem:[%s8] sm:$0x1]
        %v1038 = vperm.slane %v1036, 0
        %v1040 = vadd.f32 %v1035, %v1038
        %v1041 = vpack.c.bf16 %v1040, %v1040
        %v1042 = vld [vmem:[%s9] sm:$0xf]
        %v1043 = vld [vmem:[%s9 + $0x4] sm:$0xf]
        %v1044 = vld [vmem:[%s9 + $0x8] sm:$0xf]
        %v1045 = vld [vmem:[%s9 + $0xc] sm:$0xf]
        %v1046 = vld [vmem:[#allocation5] sm:$0x1]
        %v1048 = vperm.slane %v1046, 0
        %v1054 = vunpack.c.l.b16 %v1042
        %v1055 = vunpack.c.l.b16 %v1043
        %v1056 = vunpack.c.l.b16 %v1044
        %v1057 = vunpack.c.l.b16 %v1045
        %v1058 = vpack.c.b16 %v1055, %v1054
        %v1059 = vpack.c.b16 %v1057, %v1056
        %v1063 = vsel %vm980, %v1041, 0
        %1065 = vmatpush.bf16.msra.mxu0 0
        %1066 = vmatpush.bf16.msra.mxu0 0
        %1067 = vmatpush.bf16.msra.mxu0 0
        %1068 = vmatpush.bf16.msra.mxu0 0
        %1069 = vmatpush.bf16.msra.mxu0 0
        %1070 = vmatpush.bf16.msra.mxu0 0
        %1071 = vmatpush.bf16.msra.mxu0 %v1059
        %1072 = vmatpush.bf16.msra.mxu0 %v1058
        %1073 = vmatmul.bf16.gmra.mxu0 %v1063
        %v1074 = vpop.f32.mrf.mxu0
        %v1075 = vadd.f32 %v1048, %v1074
        %v1076 = vpop.f32.mrf.mxu0
        %1077 = vdwg.mxu0
        %v1078 = vmax.f32 %v1075, 0.0
        %v1079 = vpack.c.bf16 %v1078, %v1078
        %v1080 = vld [vmem:[%s11] sm:$0xf]
        %v1081 = vld [vmem:[%s11 + $0x4] sm:$0xf]
        %v1082 = vld [vmem:[%s11 + $0x8] sm:$0xf]
        %v1083 = vld [vmem:[%s11 + $0xc] sm:$0xf]
        %v1084 = vld [vmem:[%s11 + $0x10] sm:$0xf]
        %v1085 = vld [vmem:[%s11 + $0x14] sm:$0xf]
        %v1086 = vld [vmem:[%s11 + $0x18] sm:$0xf]
        %v1087 = vld [vmem:[%s11 + $0x1c] sm:$0xf]
        %v1088 = vld [vmem:[%s12] sm:$0x1]
        %v1090 = vperm.slane %v1088, 0
        %v1100 = vunpack.c.l.b16 %v1080
        %v1101 = vunpack.c.l.b16 %v1081
        %v1102 = vunpack.c.l.b16 %v1082
        %v1103 = vunpack.c.l.b16 %v1083
        %v1104 = vunpack.c.l.b16 %v1084
        %v1105 = vunpack.c.l.b16 %v1085
        %v1106 = vunpack.c.l.b16 %v1086
        %v1107 = vunpack.c.l.b16 %v1087
        %v1108 = vpack.c.b16 %v1101, %v1100
        %v1109 = vpack.c.b16 %v1103, %v1102
        %v1110 = vpack.c.b16 %v1105, %v1104
        %v1111 = vpack.c.b16 %v1107, %v1106
        %vm1116 = vcmask 523264
        %v1118 = vsel %vm1116, %v1079, 0
        %1120 = vmatpush.bf16.msra.mxu0 0
        %1121 = vmatpush.bf16.msra.mxu0 0
        %1122 = vmatpush.bf16.msra.mxu0 0
        %1123 = vmatpush.bf16.msra.mxu0 0
        %1124 = vmatpush.bf16.msra.mxu0 %v1111
        %1125 = vmatpush.bf16.msra.mxu0 %v1110
        %1126 = vmatpush.bf16.msra.mxu0 %v1109
        %1127 = vmatpush.bf16.msra.mxu0 %v1108
        %1128 = vmatmul.bf16.gmra.mxu0 %v1118
        %v1129 = vpop.f32.mrf.mxu0
        %v1130 = vadd.f32 %v1090, %v1129
        %v1131 = vpop.f32.mrf.mxu0
        %1132 = vdwg.mxu0
        %v1133 = vadd.f32 %v1040, %v1130
        %v1134 = vsel %vm980, %v1133, 0.0
        %1135 = vadd.xlane.f32.xlu0 %v1134
        %v1136 = vpop.xlane.xlu0 %1135
        %v1137 = vmul.f32 %v1136, %v1011
        %v1138 = vsub.f32 %v1133, %v1137
        %v1139 = vmul.f32 %v1138, %v1138
        %v1140 = vsel %vm980, %v1139, 0.0
        %1141 = vadd.xlane.f32.xlu0 %v1140
        %v1142 = vpop.xlane.xlu0 %1141
        %v1143 = vmul.f32 %v1142, %v1011
        %v1144 = vadd.f32 %v1143, 1e-05
        %v1145 = vrsqrt.pop %v1144
        %v1146 = vmul.f32 %v1145, %v1144
        %v1147 = vmul.f32 %v1146, %v1145
        %v1148 = vmul.f32 0.5, %v1147
        %v1149 = vsub.f32 1.5, %v1148
        %v1150 = vmul.f32 %v1145, %v1149
        %vm1151 = vweird.f32 %v1144
        %vm1152 = vweird.f32 %v1145
        %vm1153 = vmor %vm1151, %vm1152
        %v1154 = vsel %vm1153, %v1145, %v1150
        %v1155 = vmul.f32 %v1138, %v1154
        %v1156 = vld [vmem:[%s13] sm:$0x1]
        %v1158 = vperm.slane %v1156, 0
        %v1160 = vmul.f32 %v1155, %v1158
        %v1161 = vld [vmem:[%s14] sm:$0x1]
        %v1163 = vperm.slane %v1161, 0
        %v1165 = vadd.f32 %v1160, %v1163
        %1166 = vst.msk [vmem:[%s577] sm:$0xff] %vm980, %v1165
        // Predicated region
        $region89: #{tpu_custom_call.1} parent=79 // pred_check
          %p1167 = pneg %p599
        $region90: #{tpu_custom_call.1} parent=79 // pred_check_branch
          %1169 = sbr.rel (%p1167) target = $region92
        $region91: #{tpu_custom_call.1} parent=79 // pred_region
          %v1170 = vld [vmem:[%s597] sm:$0x1]
          %v1171 = vunpack.c.l.bf16 %v1170
          %v1172 = vld [vmem:[#allocation4] sm:$0x1]
          %v1173 = vmul.f32 %v1172, 0.25
          %v1175 = vperm.slane %v1173, 0
          %v1177 = vmul.f32 %v1175, %v1171
          %v1178 = vsub.f32 1.0, %v1171
          %v1179 = vmul.f32 %v1178, -1e+10
          %v1180 = vadd.f32 %v1177, %v1179
          %vm1181 = vcmask 58368
          %v1182 = vsel %vm1181, %v1180, -inf
          %1183 = vmax.xlane.f32.xlu0 %v1182
          %v1184 = vpop.xlane.xlu0 %1183
          %v1185 = vsub.f32 %v1180, %v1184
          %v1186 = vmul.f32 %v1185, 1.442695
          %v1187 = vpow.pop %v1186
          %v1188 = vsel %vm1181, %v1187, 0.0
          %1189 = vadd.xlane.f32.xlu0 %v1188
          %v1190 = vpop.xlane.xlu0 %1189
          %v1191 = vrcp.pop %v1190
          %v1192 = vmul.f32 %v1187, %v1191
          %v1193 = vmul.f32 %v1192, %v1171
          %vm1194 = vcmp.ne.f32.partialorder %v1193, %v1193
          %v1195 = vsel %vm1194, 0.0, %v1193
          %v1196 = vsel %vm1181, %v1195, 0.0
          %v1197 = vrot.slane %v1196, 4
          %v1198 = vadd.f32 %v1196, %v1197
          %v1199 = vrot.slane %v1198, 2
          %v1200 = vadd.f32 %v1198, %v1199
          %v1201 = vrot.slane %v1200, 1
          %v1202 = vadd.f32 %v1200, %v1201
          %1203 = vst.msk [vmem:[%s583] sm:$0x1] %vm957, %v1202
        $region92: #{tpu_custom_call.1} parent=79 // pred_fallthru
          _
        %s1204 = sand.u32 %s389, 1
        %s1205 = scalar_lea.sflag [#allocation7], %s1204
        %s1206 = sand.u32 %s389, 1
        %s1207 = smul.addr %s1206, 8
        %s1208 = scalar_lea.vmem [#allocation8], %s1207
        %s1209 = sand.u32 %s415, 1
        %s1210 = scalar_lea.sflag [#allocation10], %s1209
        %s1211 = sand.u32 %s415, 1
        %s1212 = scalar_lea.vmem [#allocation9], %s1211
        // Predicated region
        $region93: #{tpu_custom_call.1} parent=79 // pred_check
          %p1213 = pneg %p399
        $region94: #{tpu_custom_call.1} parent=79 // pred_check_branch
          %1215 = sbr.rel (%p1213) target = $region96
        $region95: #{tpu_custom_call.1} parent=79 // pred_region
          %1217 = vsyncadd %s1205, 0
          %s1218 = sadd.s32 %s40, %s39
          %s1219 = smul.addr %s1218, 8
          %s1220 = scalar_lea.hbm %s15, %s1219
          %s1222 = sshll.u32 %s1208, 4
          %s1223 = int_to_ptr.vmem [resolvable:$true] %s1222
          %s1224 = sshll.u32 %s1220, 4
          %s1225 = int_to_ptr.hbm [resolvable:$true] %s1224
          %1227 = dma.vmem_to_hbm [thread:$0]  %s1223, 128, %s1225, %s1205
        $region96: #{tpu_custom_call.1} parent=79 // pred_fallthru
          _
        // Predicated region
        $region97: #{tpu_custom_call.1} parent=79 // pred_check
          %p1228 = pneg %p425
        $region98: #{tpu_custom_call.1} parent=79 // pred_check_branch
          %1230 = sbr.rel (%p1228) target = $region100
        $region99: #{tpu_custom_call.1} parent=79 // pred_region
          %1232 = vsyncadd %s1210, 0
          %s1233 = scalar_lea.hbm %s16, %s39
          %s1235 = sshll.u32 %s1212, 4
          %s1236 = int_to_ptr.vmem [resolvable:$true] %s1235
          %s1237 = sshll.u32 %s1233, 4
          %s1238 = int_to_ptr.hbm [resolvable:$true] %s1237
          %1240 = dma.vmem_to_hbm [thread:$0]  %s1236, 16, %s1238, %s1210
        $region100: #{tpu_custom_call.1} parent=79 // pred_fallthru
          _
      $region80: #{tpu_custom_call.1} parent=5 // pred_fallthru
        _
      %p1241 = scmp.le.s32.totalorder 2, %s30
      // Predicated region
      $region101: #{tpu_custom_call.1} parent=5 // pred_check
        %p1242 = pneg %p1241
      $region102: #{tpu_custom_call.1} parent=5 // pred_check_branch
        %1244 = sbr.rel (%p1242) target = $region104
      $region103: #{tpu_custom_call.1} parent=5 // pred_region
        %s1245 = ssub.s32 %s30, 2
        // Predicated region
        $region105: #{tpu_custom_call.1} parent=103 // pred_check
          %p1246 = pneg %p405
        $region106: #{tpu_custom_call.1} parent=103 // pred_check_branch
          %1248 = sbr.rel (%p1246) target = $region108
        $region107: #{tpu_custom_call.1} parent=103 // pred_region
          %s1249 = sand.u32 %s390, 1
          %s1250 = scalar_lea.sflag [#allocation7], %s1249
          %s1251 = sand.u32 %s390, 1
          %s1252 = smul.addr %s1251, 8
          %s1253 = scalar_lea.vmem [#allocation8], %s1252
          %1255 = dma.done %s1250, 128
        $region108: #{tpu_custom_call.1} parent=103 // pred_fallthru
          _
        // Predicated region
        $region109: #{tpu_custom_call.1} parent=103 // pred_check
          %p1256 = pneg %p431
        $region110: #{tpu_custom_call.1} parent=103 // pred_check_branch
          %1258 = sbr.rel (%p1256) target = $region112
        $region111: #{tpu_custom_call.1} parent=103 // pred_region
          %s1259 = sand.u32 %s416, 1
          %s1260 = scalar_lea.sflag [#allocation10], %s1259
          %s1261 = sand.u32 %s416, 1
          %s1262 = scalar_lea.vmem [#allocation9], %s1261
          %1264 = dma.done %s1260, 16
        $region112: #{tpu_custom_call.1} parent=103 // pred_fallthru
          _
      $region104: #{tpu_custom_call.1} parent=5 // pred_fallthru
        _
    $region6: #{tpu_custom_call.1} parent=1 // loop_footer
      %s34 = sadd.s32 1, %s30
    $region7: #{tpu_custom_call.1} parent=1 // loop_footer_branch
      %29 = sbr.rel target = $region3
    $region8: #{tpu_custom_call.1} parent=1 // loop_exit
      _
    %1265 = vsyncpa [#allocation6], 1
    %s1266 = scalar_lea.sflag [#allocation6], 1
    %1267 = vsyncpa %s1266, 1
    %1268 = vsyncpa [#allocation7], 1
    %s1269 = scalar_lea.sflag [#allocation7], 1
    %1270 = vsyncpa %s1269, 1
    %1271 = vsyncpa [#allocation10], 1
    %s1272 = scalar_lea.sflag [#allocation10], 1
    %1273 = vsyncpa %s1272, 1

</llo_original>
